<compile_context>
chip_gen: v6e
topology: v6e:2x2x1
jax: 0.10.0
libtpu: 0.0.40
codegen_flags: <defaults>
</compile_context>

<pallas_src>
import jax
import jax.numpy as jnp
from jax.experimental import pallas as pl
from jax.experimental.pallas import tpu as pltpu

# Module hyper-parameters (match nn.Module defaults).
SIGMA = 0.5
EPSILON = 1e-6
LINEAR_MAX = 1000.0
PENALIZE_OUTSIDE = True

LANE = 128            # lane width (last axis)
MAX_TILE_ROWS = 256   # up to 256 x 128 = 32768 collisions per grid step
CHUNK = 8             # sublanes processed per inner-loop iteration (1 f32 vreg slab)


# ---------- small 3-vector helpers on tuples of (8, 128) arrays ----------
def _sub(a, b):
    return tuple(x - y for x, y in zip(a, b))


def _add(a, b):
    return tuple(x + y for x, y in zip(a, b))


def _scale(s, a):
    return tuple(s * x for x in a)


def _dot(a, b):
    return a[0] * b[0] + a[1] * b[1] + a[2] * b[2]


def _cross(a, b):
    return (a[1] * b[2] - a[2] * b[1],
            a[2] * b[0] - a[0] * b[2],
            a[0] * b[1] - a[1] * b[0])


def _triangle_quantities(v):
    """v: tuple of 9 (8,128) arrays [v0x..v2z] -> (circumradius, circumcenter, unit normal).

    Uses: alpha = v0 - v2 = -edge1, alpha - beta = v0 - v1 = -edge0, and
    cross(alpha, beta) == cross(edge0, edge1) exactly, so edge dot products are reused.
    """
    v0, v1, v2 = v[0:3], v[3:6], v[6:9]
    edge0 = _sub(v1, v0)
    edge1 = _sub(v2, v0)
    acb = _cross(edge0, edge1)          # a x b  (== cross(alpha, beta))
    beta = _sub(v1, v2)

    d_acb = _dot(acb, acb)
    inv_nacb = jax.lax.rsqrt(d_acb)     # 1 / ||a x b||   (shared EUP op)
    d_e0 = _dot(edge0, edge0)           # == ||alpha - beta||^2
    d_a = _dot(edge1, edge1)            # == ||alpha||^2   (alpha = -edge1)
    d_b = _dot(beta, beta)

    # ||alpha-beta|| * ||alpha|| * ||beta|| / (2||a x b||): one sqrt + shared rsqrt.
    circumradius = 0.5 * jnp.sqrt(d_e0 * d_a * d_b) * inv_nacb

    # d_a*beta - d_b*alpha == d_a*beta + d_b*edge1  (no alpha materialized)
    cc_num = _cross(_add(_scale(d_a, beta), _scale(d_b, edge1)), acb)
    inv_2dacb = 0.5 * inv_nacb * inv_nacb      # 1 / (2 ||a x b||^2), no extra EUP op
    circumcenter = _add(_scale(inv_2dacb, cc_num), v2)

    normal = _scale(inv_nacb, acb)
    return circumradius, circumcenter, normal


def _repulsion_intensity(x):
    """Penalizer; linear and quadratic regions are disjoint, so nested selects are exact."""
    quad = (-(1.0 - 2.0 * SIGMA) / (4.0 * SIGMA ** 2) * x * x
            - (1.0 / (2.0 * SIGMA)) * x + 0.25 * (3.0 - 2.0 * SIGMA))
    lin = 1.0 - SIGMA - x
    out = jnp.where((x <= -SIGMA) & (x > -LINEAR_MAX), lin, 0.0)
    if PENALIZE_OUTSIDE:
        quad_cond = (x > -SIGMA) & (x < SIGMA)
    else:
        quad_cond = (x > -SIGMA) & (x < 0.0)
    return jnp.where(quad_cond, quad, out)


def _cone_pair_loss(points, center, radius, axis):
    """Sum over the 3 triangle points of the per-point loss.

    Matches the vectorized torch path: df = mask*((1-d)*c)^2, phi = df^2,
    per-point loss = ||-phi * n||^2 with unit n  ->  phi^2.
    """
    inv_sigma = 1.0 / SIGMA
    total = None
    for pt in points:
        rel = _sub(pt, center)
        dp = _dot(rel, axis)
        perp = _sub(rel, _scale(dp, axis))
        numerator = jnp.sqrt(_dot(perp, perp))
        denominator = radius - radius * (dp * inv_sigma)       # -r/sigma*dp + r
        axis_dist = numerator / (denominator + EPSILON)        # exact divide (EUP has slack)
        circ = _repulsion_intensity(dp)
        df = jnp.where(axis_dist < 1.0,
                       jnp.square((1.0 - axis_dist) * circ), 0.0)
        phi = jnp.square(df)
        term = jnp.square(phi)          # ||n||^2 == 1 for unit normals
        total = term if total is None else total + term
    return total


# ------------------------------ Pallas kernel ------------------------------
def _penetration_kernel(recv_ref, intr_ref, valid_ref, out_ref):
    # recv_ref / intr_ref : (9, tile_r, 128)  vertex components on the leading axis
    # valid_ref           : (tile_r, 128)     1.0 for real collisions, 0.0 for pads
    # out_ref             : (8, 128) f32      per-lane loss accumulator (per split/batch)
    @pl.when(pl.program_id(2) == 0)
    def _():
        out_ref[...] = jnp.zeros_like(out_ref)

    tile_r = valid_ref.shape[0]
    n_chunks = tile_r // CHUNK

    def chunk_body(c, acc):
        rows = pl.ds(pl.multiple_of(c * CHUNK, CHUNK), CHUNK)
        rv = tuple(recv_ref[i, rows, :] for i in range(9))
        iv = tuple(intr_ref[i, rows, :] for i in range(9))
        valid = valid_ref[rows, :]

        r_rad, r_cen, r_nrm = _triangle_quantities(rv)
        i_rad, i_cen, i_nrm = _triangle_quantities(iv)

        r_pts = (rv[0:3], rv[3:6], rv[6:9])
        i_pts = (iv[0:3], iv[3:6], iv[6:9])

        recv_loss = _cone_pair_loss(i_pts, r_cen, r_rad, r_nrm)
        intr_loss = _cone_pair_loss(r_pts, i_cen, i_rad, i_nrm)

        return acc + jnp.where(valid > 0.5, recv_loss + intr_loss, 0.0)

    # Rolled loop bounds vreg pressure at large tile_r; register-carry accumulator
    # avoids a per-chunk VMEM read-modify-write on the output block.
    acc = jax.lax.fori_loop(0, n_chunks, chunk_body,
                            jnp.zeros((CHUNK, LANE), jnp.float32))
    out_ref[...] += acc


# ------------------------------ Wrapper ------------------------------------
def distance_field_penetration_loss(triangles, collision_idxs):
    """triangles: (B, F, 3, 3) float; collision_idxs: (B, C, 2) int (-1 = pad)."""
    B, F = triangles.shape[0], triangles.shape[1]
    C = collision_idxs.shape[1]
    dtype = triangles.dtype

    # --- tiling: rows of 128 collisions, tiles of up to MAX_TILE_ROWS rows ------
    rows_needed = max(1, pl.cdiv(C, LANE))
    tile_r = min(MAX_TILE_ROWS, ((rows_needed + CHUNK - 1) // CHUNK) * CHUNK)
    n_row_tiles = pl.cdiv(rows_needed, tile_r)
    if n_row_tiles >= 2:                 # 2-way row split => both TensorCores on v7x
        n_splits = 2
        n_row_tiles = ((n_row_tiles + 1) // 2) * 2
    else:
        n_splits = 1
    tiles_per_split = n_row_tiles // n_splits
    n_rows = n_row_tiles * tile_r
    c_pad = n_rows * LANE
    pad = c_pad - C

    # --- pad + clamp collision indices, build validity mask ---------------------
    recv_idx = collision_idxs[:, :, 0]
    intr_idx = collision_idxs[:, :, 1]
    valid = recv_idx >= 0
    if pad:
        recv_idx = jnp.pad(recv_idx, ((0, 0), (0, pad)), constant_values=-1)
        intr_idx = jnp.pad(intr_idx, ((0, 0), (0, pad)), constant_values=-1)
        valid = jnp.pad(valid, ((0, 0), (0, pad)), constant_values=False)
    recv_idx_c = jnp.clip(recv_idx, 0, F - 1)
    intr_idx_c = jnp.clip(intr_idx, 0, F - 1)

    # --- gather triangle vertex components per collision ------------------------
    # (B, 9, F) table gathered along the face axis with a vmapped take, so the
    # gather index operand stays (B, c_pad) (no (B,9,c_pad) broadcast in HBM).
    # TODO(synk): the gathered (B,9,c_pad) operands still round-trip HBM; on v5e an
    # in-kernel DMA gather from a VMEM-resident (9,F) table would cut that traffic.
    tri9 = jnp.transpose(triangles.reshape(B, F, 9), (0, 2, 1)).astype(jnp.float32)
    gather = jax.vmap(lambda tab, idx: jnp.take(tab, idx, axis=1))
    recv_p = gather(tri9, recv_idx_c).reshape(B, 9, n_rows, LANE)
    intr_p = gather(tri9, intr_idx_c).reshape(B, 9, n_rows, LANE)
    valid_p = valid.astype(jnp.float32).reshape(B, n_rows, LANE)

    out = pl.pallas_call(
        _penetration_kernel,
        out_shape=jax.ShapeDtypeStruct((n_splits, B, CHUNK, LANE), jnp.float32),
        grid_spec=pltpu.PrefetchScalarGridSpec(
            num_scalar_prefetch=0,
            grid=(n_splits, B, tiles_per_split),
            in_specs=[
                pl.BlockSpec((None, 9, tile_r, LANE),
                             lambda p, b, r: (b, 0, p * tiles_per_split + r, 0)),
                pl.BlockSpec((None, 9, tile_r, LANE),
                             lambda p, b, r: (b, 0, p * tiles_per_split + r, 0)),
                pl.BlockSpec((None, tile_r, LANE),
                             lambda p, b, r: (b, p * tiles_per_split + r, 0)),
            ],
            out_specs=pl.BlockSpec((None, None, CHUNK, LANE),
                                   lambda p, b, r: (p, b, 0, 0)),
        ),
        compiler_params=pltpu.CompilerParams(
            dimension_semantics=("parallel", "parallel", "arbitrary")),
    )(recv_p, intr_p, valid_p)

    # Tiny final reduction over splits / sublanes / lanes in plain JAX.
    return out.sum(axis=(0, 2, 3)).astype(dtype)


# ------------------------ pure-JAX reference (torch semantics) ---------------
def _reference_loss(triangles, collision_idxs):
    B, F = triangles.shape[:2]
    dtype = triangles.dtype
    recv_idx = collision_idxs[:, :, 0]
    intr_idx = collision_idxs[:, :, 1]
    valid = (recv_idx >= 0).astype(dtype)
    ri = jnp.clip(recv_idx, 0, F - 1)
    ii = jnp.clip(intr_idx, 0, F - 1)
    barange = jnp.arange(B)[:, None]

    def nrm(x):
        return jnp.linalg.norm(x, axis=-1, keepdims=True)

    edge0 = triangles[:, :, 1] - triangles[:, :, 0]
    edge1 = triangles[:, :, 2] - triangles[:, :, 0]
    a_cross_b = jnp.cross(edge0, edge1)
    alpha = triangles[:, :, 0] - triangles[:, :, 2]
    beta = triangles[:, :, 1] - triangles[:, :, 2]
    circumradius = nrm(alpha - beta) / (2 * nrm(a_cross_b)) * nrm(alpha) * nrm(beta)
    circumcenter = jnp.cross(
        jnp.sum(alpha ** 2, -1, keepdims=True) * beta
        - jnp.sum(beta ** 2, -1, keepdims=True) * alpha,
        jnp.cross(alpha, beta))
    circumcenter = (circumcenter / (2 * jnp.sum(a_cross_b ** 2, -1, keepdims=True))
                    + triangles[:, :, 2])
    normals = a_cross_b / nrm(a_cross_b)

    recv_tri, intr_tri = triangles[barange, ri], triangles[barange, ii]
    r_nrm, r_rad, r_cen = normals[barange, ri], circumradius[barange, ri], circumcenter[barange, ri]
    i_nrm, i_rad, i_cen = normals[barange, ii], circumradius[barange, ii], circumcenter[barange, ii]

    def cone_field(pts, center, radius, axis):
        rel = pts - center[:, :, None, :]
        dp = jnp.sum(rel * axis[:, :, None, :], -1)
        num = jnp.linalg.norm(rel - dp[..., None] * axis[:, :, None, :], axis=-1)
        den = -radius / SIGMA * dp + radius
        axis_dist = num / (den + EPSILON)
        quad = (-(1 - 2 * SIGMA) / (4 * SIGMA ** 2) * dp ** 2
                - 1 / (2 * SIGMA) * dp + 0.25 * (3 - 2 * SIGMA))
        lin_mask = ((dp <= -SIGMA) & (dp > -LINEAR_MAX)).astype(dtype)
        quad_mask = ((dp > -SIGMA) & (dp < SIGMA)).astype(dtype)
        circ = lin_mask * (-dp + 1 - SIGMA) + quad_mask * quad
        inside = (axis_dist < 1).astype(dtype)
        df = inside * ((1 - axis_dist) * circ) ** 2
        return df ** 2

    phi_r = cone_field(intr_tri, r_cen, r_rad, r_nrm)
    phi_i = cone_field(recv_tri, i_cen, i_rad, i_nrm)
    recv_loss = jnp.sum(
        jnp.linalg.norm(-phi_r[..., None] * i_nrm[:, :, None, :], axis=-1) ** 2, -1)
    intr_loss = jnp.sum(
        jnp.linalg.norm(-phi_i[..., None] * r_nrm[:, :, None, :], axis=-1) ** 2, -1)
    return jnp.sum(jnp.where(valid > 0, recv_loss + intr_loss, 0.0), axis=-1)


if __name__ == "__main__":
    key = jax.random.PRNGKey(0)
    k1, k2, k3, k4 = jax.random.split(key, 4)
    B, F, C = 2, 16, 8
    triangles = jax.random.normal(k1, (B, F, 3, 3), dtype=jnp.float32)
    recv = jax.random.randint(k2, (B, C), 0, F)
    intr = jax.random.randint(k3, (B, C), 0, F)
    keep = jax.random.bernoulli(k4, 0.75, (B, C))
    collision_idxs = jnp.stack(
        [jnp.where(keep, recv, -1), jnp.where(keep, intr, -1)], axis=-1
    ).astype(jnp.int32)

    loss = distance_field_penetration_loss(triangles, collision_idxs)
    loss = jax.block_until_ready(loss)

    ref = _reference_loss(triangles, collision_idxs)
    assert loss.shape == (B,)
    assert bool(jnp.all(jnp.isfinite(loss)))
    # Remaining difference vs. the norm/divide reference comes from the shared
    # rsqrt-based circumcircle formulation, amplified by the ^8 power in the loss.
    assert jnp.allclose(loss, ref, rtol=1e-2, atol=1e-6), (loss, ref)
    print("KERNEL_OK")
</pallas_src>

<mosaic_0001>
module attributes {stable_mosaic.version = 11 : i64} {
  func.func @_penetration_kernel(%arg0: i32, %arg1: i32, %arg2: i32, %arg3: memref<1x9x8x128xf32, #tpu.memory_space<vmem>>, %arg4: memref<1x9x8x128xf32, #tpu.memory_space<vmem>>, %arg5: memref<1x8x128xf32, #tpu.memory_space<vmem>>, %arg6: memref<1x1x8x128xf32, #tpu.memory_space<vmem>>) attributes {dimension_semantics = [#tpu.dimension_semantics<parallel>, #tpu.dimension_semantics<parallel>, #tpu.dimension_semantics<arbitrary>], iteration_bounds = array<i64: 1, 2, 1>, scalar_prefetch = 0 : i64, scratch_operands = 0 : i64, tpu.core_type = #tpu.core_type<tc>, window_params = [{transform_indices = @transform_0, window_bounds = array<i64: 1, 9, 8, 128>}, {transform_indices = @transform_1, window_bounds = array<i64: 1, 9, 8, 128>}, {transform_indices = @transform_2, window_bounds = array<i64: 1, 8, 128>}, {transform_indices = @transform_3, window_bounds = array<i64: 1, 1, 8, 128>}]} {
    %c0_i32 = arith.constant 0 : i32
    %0 = arith.cmpi eq, %arg2, %c0_i32 : i32
    %1 = arith.extui %0 : i1 to i32
    %c0_i32_0 = arith.constant 0 : i32
    %2 = arith.cmpi ne, %1, %c0_i32_0 : i32
    scf.if %2 {
      %cst_147 = arith.constant 0.000000e+00 : f32
      %589 = vector.broadcast %cst_147 : f32 to vector<8x128xf32>
      %c0_148 = arith.constant 0 : index
      %c0_149 = arith.constant 0 : index
      %c0_150 = arith.constant 0 : index
      %c0_151 = arith.constant 0 : index
      %590 = vector.load %arg6[%c0_148, %c0_149, %c0_150, %c0_151] : memref<1x1x8x128xf32, #tpu.memory_space<vmem>>, vector<1x1x8x128xf32>
      %591 = vector.shape_cast %590 : vector<1x1x8x128xf32> to vector<8x128xf32>
      %592 = vector.shape_cast %589 : vector<8x128xf32> to vector<1x1x8x128xf32>
      tpu.vector_store %arg6[%c0_148, %c0_149, %c0_150, %c0_151], %592 {strides = array<i32>} : memref<1x1x8x128xf32, #tpu.memory_space<vmem>>, vector<1x1x8x128xf32>,
    } else {
    }
    %cst = arith.constant 0.000000e+00 : f32
    %3 = vector.broadcast %cst : f32 to vector<8x128xf32>
    %c0_i32_1 = arith.constant 0 : i32
    %c8_i32 = arith.constant 8 : i32
    %4 = arith.muli %c0_i32_1, %c8_i32 : i32
    %5 = tpu.assume_multiple %4, 8 : i32
    %c0 = arith.constant 0 : index
    %c0_2 = arith.constant 0 : index
    %6 = arith.index_cast %5 : i32 to index
    %c0_3 = arith.constant 0 : index
    %7 = vector.load %arg3[%c0, %c0_2, %6, %c0_3] : memref<1x9x8x128xf32, #tpu.memory_space<vmem>>, vector<1x1x8x128xf32>
    %8 = vector.shape_cast %7 : vector<1x1x8x128xf32> to vector<8x128xf32>
    %c0_4 = arith.constant 0 : index
    %c1 = arith.constant 1 : index
    %9 = arith.index_cast %5 : i32 to index
    %c0_5 = arith.constant 0 : index
    %10 = vector.load %arg3[%c0_4, %c1, %9, %c0_5] : memref<1x9x8x128xf32, #tpu.memory_space<vmem>>, vector<1x1x8x128xf32>
    %11 = vector.shape_cast %10 : vector<1x1x8x128xf32> to vector<8x128xf32>
    %c0_6 = arith.constant 0 : index
    %c2 = arith.constant 2 : index
    %12 = arith.index_cast %5 : i32 to index
    %c0_7 = arith.constant 0 : index
    %13 = vector.load %arg3[%c0_6, %c2, %12, %c0_7] : memref<1x9x8x128xf32, #tpu.memory_space<vmem>>, vector<1x1x8x128xf32>
    %14 = vector.shape_cast %13 : vector<1x1x8x128xf32> to vector<8x128xf32>
    %c0_8 = arith.constant 0 : index
    %c3 = arith.constant 3 : index
    %15 = arith.index_cast %5 : i32 to index
    %c0_9 = arith.constant 0 : index
    %16 = vector.load %arg3[%c0_8, %c3, %15, %c0_9] : memref<1x9x8x128xf32, #tpu.memory_space<vmem>>, vector<1x1x8x128xf32>
    %17 = vector.shape_cast %16 : vector<1x1x8x128xf32> to vector<8x128xf32>
    %c0_10 = arith.constant 0 : index
    %c4 = arith.constant 4 : index
    %18 = arith.index_cast %5 : i32 to index
    %c0_11 = arith.constant 0 : index
    %19 = vector.load %arg3[%c0_10, %c4, %18, %c0_11] : memref<1x9x8x128xf32, #tpu.memory_space<vmem>>, vector<1x1x8x128xf32>
    %20 = vector.shape_cast %19 : vector<1x1x8x128xf32> to vector<8x128xf32>
    %c0_12 = arith.constant 0 : index
    %c5 = arith.constant 5 : index
    %21 = arith.index_cast %5 : i32 to index
    %c0_13 = arith.constant 0 : index
    %22 = vector.load %arg3[%c0_12, %c5, %21, %c0_13] : memref<1x9x8x128xf32, #tpu.memory_space<vmem>>, vector<1x1x8x128xf32>
    %23 = vector.shape_cast %22 : vector<1x1x8x128xf32> to vector<8x128xf32>
    %c0_14 = arith.constant 0 : index
    %c6 = arith.constant 6 : index
    %24 = arith.index_cast %5 : i32 to index
    %c0_15 = arith.constant 0 : index
    %25 = vector.load %arg3[%c0_14, %c6, %24, %c0_15] : memref<1x9x8x128xf32, #tpu.memory_space<vmem>>, vector<1x1x8x128xf32>
    %26 = vector.shape_cast %25 : vector<1x1x8x128xf32> to vector<8x128xf32>
    %c0_16 = arith.constant 0 : index
    %c7 = arith.constant 7 : index
    %27 = arith.index_cast %5 : i32 to index
    %c0_17 = arith.constant 0 : index
    %28 = vector.load %arg3[%c0_16, %c7, %27, %c0_17] : memref<1x9x8x128xf32, #tpu.memory_space<vmem>>, vector<1x1x8x128xf32>
    %29 = vector.shape_cast %28 : vector<1x1x8x128xf32> to vector<8x128xf32>
    %c0_18 = arith.constant 0 : index
    %c8 = arith.constant 8 : index
    %30 = arith.index_cast %5 : i32 to index
    %c0_19 = arith.constant 0 : index
    %31 = vector.load %arg3[%c0_18, %c8, %30, %c0_19] : memref<1x9x8x128xf32, #tpu.memory_space<vmem>>, vector<1x1x8x128xf32>
    %32 = vector.shape_cast %31 : vector<1x1x8x128xf32> to vector<8x128xf32>
    %c0_20 = arith.constant 0 : index
    %c0_21 = arith.constant 0 : index
    %33 = arith.index_cast %5 : i32 to index
    %c0_22 = arith.constant 0 : index
    %34 = vector.load %arg4[%c0_20, %c0_21, %33, %c0_22] : memref<1x9x8x128xf32, #tpu.memory_space<vmem>>, vector<1x1x8x128xf32>
    %35 = vector.shape_cast %34 : vector<1x1x8x128xf32> to vector<8x128xf32>
    %c0_23 = arith.constant 0 : index
    %c1_24 = arith.constant 1 : index
    %36 = arith.index_cast %5 : i32 to index
    %c0_25 = arith.constant 0 : index
    %37 = vector.load %arg4[%c0_23, %c1_24, %36, %c0_25] : memref<1x9x8x128xf32, #tpu.memory_space<vmem>>, vector<1x1x8x128xf32>
    %38 = vector.shape_cast %37 : vector<1x1x8x128xf32> to vector<8x128xf32>
    %c0_26 = arith.constant 0 : index
    %c2_27 = arith.constant 2 : index
    %39 = arith.index_cast %5 : i32 to index
    %c0_28 = arith.constant 0 : index
    %40 = vector.load %arg4[%c0_26, %c2_27, %39, %c0_28] : memref<1x9x8x128xf32, #tpu.memory_space<vmem>>, vector<1x1x8x128xf32>
    %41 = vector.shape_cast %40 : vector<1x1x8x128xf32> to vector<8x128xf32>
    %c0_29 = arith.constant 0 : index
    %c3_30 = arith.constant 3 : index
    %42 = arith.index_cast %5 : i32 to index
    %c0_31 = arith.constant 0 : index
    %43 = vector.load %arg4[%c0_29, %c3_30, %42, %c0_31] : memref<1x9x8x128xf32, #tpu.memory_space<vmem>>, vector<1x1x8x128xf32>
    %44 = vector.shape_cast %43 : vector<1x1x8x128xf32> to vector<8x128xf32>
    %c0_32 = arith.constant 0 : index
    %c4_33 = arith.constant 4 : index
    %45 = arith.index_cast %5 : i32 to index
    %c0_34 = arith.constant 0 : index
    %46 = vector.load %arg4[%c0_32, %c4_33, %45, %c0_34] : memref<1x9x8x128xf32, #tpu.memory_space<vmem>>, vector<1x1x8x128xf32>
    %47 = vector.shape_cast %46 : vector<1x1x8x128xf32> to vector<8x128xf32>
    %c0_35 = arith.constant 0 : index
    %c5_36 = arith.constant 5 : index
    %48 = arith.index_cast %5 : i32 to index
    %c0_37 = arith.constant 0 : index
    %49 = vector.load %arg4[%c0_35, %c5_36, %48, %c0_37] : memref<1x9x8x128xf32, #tpu.memory_space<vmem>>, vector<1x1x8x128xf32>
    %50 = vector.shape_cast %49 : vector<1x1x8x128xf32> to vector<8x128xf32>
    %c0_38 = arith.constant 0 : index
    %c6_39 = arith.constant 6 : index
    %51 = arith.index_cast %5 : i32 to index
    %c0_40 = arith.constant 0 : index
    %52 = vector.load %arg4[%c0_38, %c6_39, %51, %c0_40] : memref<1x9x8x128xf32, #tpu.memory_space<vmem>>, vector<1x1x8x128xf32>
    %53 = vector.shape_cast %52 : vector<1x1x8x128xf32> to vector<8x128xf32>
    %c0_41 = arith.constant 0 : index
    %c7_42 = arith.constant 7 : index
    %54 = arith.index_cast %5 : i32 to index
    %c0_43 = arith.constant 0 : index
    %55 = vector.load %arg4[%c0_41, %c7_42, %54, %c0_43] : memref<1x9x8x128xf32, #tpu.memory_space<vmem>>, vector<1x1x8x128xf32>
    %56 = vector.shape_cast %55 : vector<1x1x8x128xf32> to vector<8x128xf32>
    %c0_44 = arith.constant 0 : index
    %c8_45 = arith.constant 8 : index
    %57 = arith.index_cast %5 : i32 to index
    %c0_46 = arith.constant 0 : index
    %58 = vector.load %arg4[%c0_44, %c8_45, %57, %c0_46] : memref<1x9x8x128xf32, #tpu.memory_space<vmem>>, vector<1x1x8x128xf32>
    %59 = vector.shape_cast %58 : vector<1x1x8x128xf32> to vector<8x128xf32>
    %c0_47 = arith.constant 0 : index
    %60 = arith.index_cast %5 : i32 to index
    %c0_48 = arith.constant 0 : index
    %61 = vector.load %arg5[%c0_47, %60, %c0_48] : memref<1x8x128xf32, #tpu.memory_space<vmem>>, vector<1x8x128xf32>
    %62 = vector.shape_cast %61 : vector<1x8x128xf32> to vector<8x128xf32>
    %63 = arith.subf %17, %8 : vector<8x128xf32>
    %64 = arith.subf %20, %11 : vector<8x128xf32>
    %65 = arith.subf %23, %14 : vector<8x128xf32>
    %66 = arith.subf %26, %8 : vector<8x128xf32>
    %67 = arith.subf %29, %11 : vector<8x128xf32>
    %68 = arith.subf %32, %14 : vector<8x128xf32>
    %69 = arith.mulf %64, %68 : vector<8x128xf32>
    %70 = arith.mulf %65, %67 : vector<8x128xf32>
    %71 = arith.subf %69, %70 : vector<8x128xf32>
    %72 = arith.mulf %65, %66 : vector<8x128xf32>
    %73 = arith.mulf %63, %68 : vector<8x128xf32>
    %74 = arith.subf %72, %73 : vector<8x128xf32>
    %75 = arith.mulf %63, %67 : vector<8x128xf32>
    %76 = arith.mulf %64, %66 : vector<8x128xf32>
    %77 = arith.subf %75, %76 : vector<8x128xf32>
    %78 = arith.subf %17, %26 : vector<8x128xf32>
    %79 = arith.subf %20, %29 : vector<8x128xf32>
    %80 = arith.subf %23, %32 : vector<8x128xf32>
    %81 = arith.mulf %71, %71 : vector<8x128xf32>
    %82 = arith.mulf %74, %74 : vector<8x128xf32>
    %83 = arith.addf %81, %82 : vector<8x128xf32>
    %84 = arith.mulf %77, %77 : vector<8x128xf32>
    %85 = arith.addf %83, %84 : vector<8x128xf32>
    %86 = math.rsqrt %85 : vector<8x128xf32>
    %87 = arith.mulf %63, %63 : vector<8x128xf32>
    %88 = arith.mulf %64, %64 : vector<8x128xf32>
    %89 = arith.addf %87, %88 : vector<8x128xf32>
    %90 = arith.mulf %65, %65 : vector<8x128xf32>
    %91 = arith.addf %89, %90 : vector<8x128xf32>
    %92 = arith.mulf %66, %66 : vector<8x128xf32>
    %93 = arith.mulf %67, %67 : vector<8x128xf32>
    %94 = arith.addf %92, %93 : vector<8x128xf32>
    %95 = arith.mulf %68, %68 : vector<8x128xf32>
    %96 = arith.addf %94, %95 : vector<8x128xf32>
    %97 = arith.mulf %78, %78 : vector<8x128xf32>
    %98 = arith.mulf %79, %79 : vector<8x128xf32>
    %99 = arith.addf %97, %98 : vector<8x128xf32>
    %100 = arith.mulf %80, %80 : vector<8x128xf32>
    %101 = arith.addf %99, %100 : vector<8x128xf32>
    %102 = arith.mulf %91, %96 : vector<8x128xf32>
    %103 = arith.mulf %102, %101 : vector<8x128xf32>
    %104 = math.sqrt %103 : vector<8x128xf32>
    %cst_49 = arith.constant 5.000000e-01 : f32
    %105 = vector.broadcast %cst_49 : f32 to vector<8x128xf32>
    %106 = arith.mulf %105, %104 : vector<8x128xf32>
    %107 = arith.mulf %106, %86 : vector<8x128xf32>
    %108 = arith.mulf %96, %78 : vector<8x128xf32>
    %109 = arith.mulf %96, %79 : vector<8x128xf32>
    %110 = arith.mulf %96, %80 : vector<8x128xf32>
    %111 = arith.mulf %101, %66 : vector<8x128xf32>
    %112 = arith.mulf %101, %67 : vector<8x128xf32>
    %113 = arith.mulf %101, %68 : vector<8x128xf32>
    %114 = arith.addf %108, %111 : vector<8x128xf32>
    %115 = arith.addf %109, %112 : vector<8x128xf32>
    %116 = arith.addf %110, %113 : vector<8x128xf32>
    %117 = arith.mulf %115, %77 : vector<8x128xf32>
    %118 = arith.mulf %116, %74 : vector<8x128xf32>
    %119 = arith.subf %117, %118 : vector<8x128xf32>
    %120 = arith.mulf %116, %71 : vector<8x128xf32>
    %121 = arith.mulf %114, %77 : vector<8x128xf32>
    %122 = arith.subf %120, %121 : vector<8x128xf32>
    %123 = arith.mulf %114, %74 : vector<8x128xf32>
    %124 = arith.mulf %115, %71 : vector<8x128xf32>
    %125 = arith.subf %123, %124 : vector<8x128xf32>
    %cst_50 = arith.constant 5.000000e-01 : f32
    %126 = vector.broadcast %cst_50 : f32 to vector<8x128xf32>
    %127 = arith.mulf %126, %86 : vector<8x128xf32>
    %128 = arith.mulf %127, %86 : vector<8x128xf32>
    %129 = arith.mulf %128, %119 : vector<8x128xf32>
    %130 = arith.mulf %128, %122 : vector<8x128xf32>
    %131 = arith.mulf %128, %125 : vector<8x128xf32>
    %132 = arith.addf %129, %26 : vector<8x128xf32>
    %133 = arith.addf %130, %29 : vector<8x128xf32>
    %134 = arith.addf %131, %32 : vector<8x128xf32>
    %135 = arith.mulf %86, %71 : vector<8x128xf32>
    %136 = arith.mulf %86, %74 : vector<8x128xf32>
    %137 = arith.mulf %86, %77 : vector<8x128xf32>
    %138 = arith.subf %44, %35 : vector<8x128xf32>
    %139 = arith.subf %47, %38 : vector<8x128xf32>
    %140 = arith.subf %50, %41 : vector<8x128xf32>
    %141 = arith.subf %53, %35 : vector<8x128xf32>
    %142 = arith.subf %56, %38 : vector<8x128xf32>
    %143 = arith.subf %59, %41 : vector<8x128xf32>
    %144 = arith.mulf %139, %143 : vector<8x128xf32>
    %145 = arith.mulf %140, %142 : vector<8x128xf32>
    %146 = arith.subf %144, %145 : vector<8x128xf32>
    %147 = arith.mulf %140, %141 : vector<8x128xf32>
    %148 = arith.mulf %138, %143 : vector<8x128xf32>
    %149 = arith.subf %147, %148 : vector<8x128xf32>
    %150 = arith.mulf %138, %142 : vector<8x128xf32>
    %151 = arith.mulf %139, %141 : vector<8x128xf32>
    %152 = arith.subf %150, %151 : vector<8x128xf32>
    %153 = arith.subf %44, %53 : vector<8x128xf32>
    %154 = arith.subf %47, %56 : vector<8x128xf32>
    %155 = arith.subf %50, %59 : vector<8x128xf32>
    %156 = arith.mulf %146, %146 : vector<8x128xf32>
    %157 = arith.mulf %149, %149 : vector<8x128xf32>
    %158 = arith.addf %156, %157 : vector<8x128xf32>
    %159 = arith.mulf %152, %152 : vector<8x128xf32>
    %160 = arith.addf %158, %159 : vector<8x128xf32>
    %161 = math.rsqrt %160 : vector<8x128xf32>
    %162 = arith.mulf %138, %138 : vector<8x128xf32>
    %163 = arith.mulf %139, %139 : vector<8x128xf32>
    %164 = arith.addf %162, %163 : vector<8x128xf32>
    %165 = arith.mulf %140, %140 : vector<8x128xf32>
    %166 = arith.addf %164, %165 : vector<8x128xf32>
    %167 = arith.mulf %141, %141 : vector<8x128xf32>
    %168 = arith.mulf %142, %142 : vector<8x128xf32>
    %169 = arith.addf %167, %168 : vector<8x128xf32>
    %170 = arith.mulf %143, %143 : vector<8x128xf32>
    %171 = arith.addf %169, %170 : vector<8x128xf32>
    %172 = arith.mulf %153, %153 : vector<8x128xf32>
    %173 = arith.mulf %154, %154 : vector<8x128xf32>
    %174 = arith.addf %172, %173 : vector<8x128xf32>
    %175 = arith.mulf %155, %155 : vector<8x128xf32>
    %176 = arith.addf %174, %175 : vector<8x128xf32>
    %177 = arith.mulf %166, %171 : vector<8x128xf32>
    %178 = arith.mulf %177, %176 : vector<8x128xf32>
    %179 = math.sqrt %178 : vector<8x128xf32>
    %cst_51 = arith.constant 5.000000e-01 : f32
    %180 = vector.broadcast %cst_51 : f32 to vector<8x128xf32>
    %181 = arith.mulf %180, %179 : vector<8x128xf32>
    %182 = arith.mulf %181, %161 : vector<8x128xf32>
    %183 = arith.mulf %171, %153 : vector<8x128xf32>
    %184 = arith.mulf %171, %154 : vector<8x128xf32>
    %185 = arith.mulf %171, %155 : vector<8x128xf32>
    %186 = arith.mulf %176, %141 : vector<8x128xf32>
    %187 = arith.mulf %176, %142 : vector<8x128xf32>
    %188 = arith.mulf %176, %143 : vector<8x128xf32>
    %189 = arith.addf %183, %186 : vector<8x128xf32>
    %190 = arith.addf %184, %187 : vector<8x128xf32>
    %191 = arith.addf %185, %188 : vector<8x128xf32>
    %192 = arith.mulf %190, %152 : vector<8x128xf32>
    %193 = arith.mulf %191, %149 : vector<8x128xf32>
    %194 = arith.subf %192, %193 : vector<8x128xf32>
    %195 = arith.mulf %191, %146 : vector<8x128xf32>
    %196 = arith.mulf %189, %152 : vector<8x128xf32>
    %197 = arith.subf %195, %196 : vector<8x128xf32>
    %198 = arith.mulf %189, %149 : vector<8x128xf32>
    %199 = arith.mulf %190, %146 : vector<8x128xf32>
    %200 = arith.subf %198, %199 : vector<8x128xf32>
    %cst_52 = arith.constant 5.000000e-01 : f32
    %201 = vector.broadcast %cst_52 : f32 to vector<8x128xf32>
    %202 = arith.mulf %201, %161 : vector<8x128xf32>
    %203 = arith.mulf %202, %161 : vector<8x128xf32>
    %204 = arith.mulf %203, %194 : vector<8x128xf32>
    %205 = arith.mulf %203, %197 : vector<8x128xf32>
    %206 = arith.mulf %203, %200 : vector<8x128xf32>
    %207 = arith.addf %204, %53 : vector<8x128xf32>
    %208 = arith.addf %205, %56 : vector<8x128xf32>
    %209 = arith.addf %206, %59 : vector<8x128xf32>
    %210 = arith.mulf %161, %146 : vector<8x128xf32>
    %211 = arith.mulf %161, %149 : vector<8x128xf32>
    %212 = arith.mulf %161, %152 : vector<8x128xf32>
    %213 = arith.subf %35, %132 : vector<8x128xf32>
    %214 = arith.subf %38, %133 : vector<8x128xf32>
    %215 = arith.subf %41, %134 : vector<8x128xf32>
    %216 = arith.mulf %213, %135 : vector<8x128xf32>
    %217 = arith.mulf %214, %136 : vector<8x128xf32>
    %218 = arith.addf %216, %217 : vector<8x128xf32>
    %219 = arith.mulf %215, %137 : vector<8x128xf32>
    %220 = arith.addf %218, %219 : vector<8x128xf32>
    %221 = arith.mulf %220, %135 : vector<8x128xf32>
    %222 = arith.mulf %220, %136 : vector<8x128xf32>
    %223 = arith.mulf %220, %137 : vector<8x128xf32>
    %224 = arith.subf %213, %221 : vector<8x128xf32>
    %225 = arith.subf %214, %222 : vector<8x128xf32>
    %226 = arith.subf %215, %223 : vector<8x128xf32>
    %227 = arith.mulf %224, %224 : vector<8x128xf32>
    %228 = arith.mulf %225, %225 : vector<8x128xf32>
    %229 = arith.addf %227, %228 : vector<8x128xf32>
    %230 = arith.mulf %226, %226 : vector<8x128xf32>
    %231 = arith.addf %229, %230 : vector<8x128xf32>
    %232 = math.sqrt %231 : vector<8x128xf32>
    %cst_53 = arith.constant 2.000000e+00 : f32
    %233 = vector.broadcast %cst_53 : f32 to vector<8x128xf32>
    %234 = arith.mulf %220, %233 : vector<8x128xf32>
    %235 = arith.mulf %107, %234 : vector<8x128xf32>
    %236 = arith.subf %107, %235 : vector<8x128xf32>
    %cst_54 = arith.constant 9.99999997E-7 : f32
    %237 = vector.broadcast %cst_54 : f32 to vector<8x128xf32>
    %238 = arith.addf %236, %237 : vector<8x128xf32>
    %239 = arith.divf %232, %238 : vector<8x128xf32>
    %cst_55 = arith.constant -0.000000e+00 : f32
    %240 = vector.broadcast %cst_55 : f32 to vector<8x128xf32>
    %241 = arith.mulf %240, %220 : vector<8x128xf32>
    %242 = arith.mulf %241, %220 : vector<8x128xf32>
    %cst_56 = arith.constant 1.000000e+00 : f32
    %243 = vector.broadcast %cst_56 : f32 to vector<8x128xf32>
    %244 = arith.mulf %243, %220 : vector<8x128xf32>
    %245 = arith.subf %242, %244 : vector<8x128xf32>
    %cst_57 = arith.constant 5.000000e-01 : f32
    %246 = vector.broadcast %cst_57 : f32 to vector<8x128xf32>
    %247 = arith.addf %245, %246 : vector<8x128xf32>
    %cst_58 = arith.constant 5.000000e-01 : f32
    %248 = vector.broadcast %cst_58 : f32 to vector<8x128xf32>
    %249 = arith.subf %248, %220 : vector<8x128xf32>
    %cst_59 = arith.constant -5.000000e-01 : f32
    %250 = vector.broadcast %cst_59 : f32 to vector<8x128xf32>
    %251 = arith.cmpf ole, %220, %250 : vector<8x128xf32>
    %cst_60 = arith.constant -1.000000e+03 : f32
    %252 = vector.broadcast %cst_60 : f32 to vector<8x128xf32>
    %253 = arith.cmpf ogt, %220, %252 : vector<8x128xf32>
    %254 = arith.andi %251, %253 : vector<8x128xi1>
    %cst_61 = arith.constant 0.000000e+00 : f32
    %255 = vector.broadcast %cst_61 : f32 to vector<8x128xf32>
    %256 = arith.select %254, %249, %255 : vector<8x128xi1>, vector<8x128xf32>
    %cst_62 = arith.constant -5.000000e-01 : f32
    %257 = vector.broadcast %cst_62 : f32 to vector<8x128xf32>
    %258 = arith.cmpf ogt, %220, %257 : vector<8x128xf32>
    %cst_63 = arith.constant 5.000000e-01 : f32
    %259 = vector.broadcast %cst_63 : f32 to vector<8x128xf32>
    %260 = arith.cmpf olt, %220, %259 : vector<8x128xf32>
    %261 = arith.andi %258, %260 : vector<8x128xi1>
    %262 = arith.select %261, %247, %256 : vector<8x128xi1>, vector<8x128xf32>
    %cst_64 = arith.constant 1.000000e+00 : f32
    %263 = vector.broadcast %cst_64 : f32 to vector<8x128xf32>
    %264 = arith.cmpf olt, %239, %263 : vector<8x128xf32>
    %cst_65 = arith.constant 1.000000e+00 : f32
    %265 = vector.broadcast %cst_65 : f32 to vector<8x128xf32>
    %266 = arith.subf %265, %239 : vector<8x128xf32>
    %267 = arith.mulf %266, %262 : vector<8x128xf32>
    %268 = arith.mulf %267, %267 : vector<8x128xf32>
    %cst_66 = arith.constant 0.000000e+00 : f32
    %269 = vector.broadcast %cst_66 : f32 to vector<8x128xf32>
    %270 = arith.select %264, %268, %269 : vector<8x128xi1>, vector<8x128xf32>
    %271 = arith.mulf %270, %270 : vector<8x128xf32>
    %272 = arith.mulf %271, %271 : vector<8x128xf32>
    %273 = arith.subf %44, %132 : vector<8x128xf32>
    %274 = arith.subf %47, %133 : vector<8x128xf32>
    %275 = arith.subf %50, %134 : vector<8x128xf32>
    %276 = arith.mulf %273, %135 : vector<8x128xf32>
    %277 = arith.mulf %274, %136 : vector<8x128xf32>
    %278 = arith.addf %276, %277 : vector<8x128xf32>
    %279 = arith.mulf %275, %137 : vector<8x128xf32>
    %280 = arith.addf %278, %279 : vector<8x128xf32>
    %281 = arith.mulf %280, %135 : vector<8x128xf32>
    %282 = arith.mulf %280, %136 : vector<8x128xf32>
    %283 = arith.mulf %280, %137 : vector<8x128xf32>
    %284 = arith.subf %273, %281 : vector<8x128xf32>
    %285 = arith.subf %274, %282 : vector<8x128xf32>
    %286 = arith.subf %275, %283 : vector<8x128xf32>
    %287 = arith.mulf %284, %284 : vector<8x128xf32>
    %288 = arith.mulf %285, %285 : vector<8x128xf32>
    %289 = arith.addf %287, %288 : vector<8x128xf32>
    %290 = arith.mulf %286, %286 : vector<8x128xf32>
    %291 = arith.addf %289, %290 : vector<8x128xf32>
    %292 = math.sqrt %291 : vector<8x128xf32>
    %cst_67 = arith.constant 2.000000e+00 : f32
    %293 = vector.broadcast %cst_67 : f32 to vector<8x128xf32>
    %294 = arith.mulf %280, %293 : vector<8x128xf32>
    %295 = arith.mulf %107, %294 : vector<8x128xf32>
    %296 = arith.subf %107, %295 : vector<8x128xf32>
    %cst_68 = arith.constant 9.99999997E-7 : f32
    %297 = vector.broadcast %cst_68 : f32 to vector<8x128xf32>
    %298 = arith.addf %296, %297 : vector<8x128xf32>
    %299 = arith.divf %292, %298 : vector<8x128xf32>
    %cst_69 = arith.constant -0.000000e+00 : f32
    %300 = vector.broadcast %cst_69 : f32 to vector<8x128xf32>
    %301 = arith.mulf %300, %280 : vector<8x128xf32>
    %302 = arith.mulf %301, %280 : vector<8x128xf32>
    %cst_70 = arith.constant 1.000000e+00 : f32
    %303 = vector.broadcast %cst_70 : f32 to vector<8x128xf32>
    %304 = arith.mulf %303, %280 : vector<8x128xf32>
    %305 = arith.subf %302, %304 : vector<8x128xf32>
    %cst_71 = arith.constant 5.000000e-01 : f32
    %306 = vector.broadcast %cst_71 : f32 to vector<8x128xf32>
    %307 = arith.addf %305, %306 : vector<8x128xf32>
    %cst_72 = arith.constant 5.000000e-01 : f32
    %308 = vector.broadcast %cst_72 : f32 to vector<8x128xf32>
    %309 = arith.subf %308, %280 : vector<8x128xf32>
    %cst_73 = arith.constant -5.000000e-01 : f32
    %310 = vector.broadcast %cst_73 : f32 to vector<8x128xf32>
    %311 = arith.cmpf ole, %280, %310 : vector<8x128xf32>
    %cst_74 = arith.constant -1.000000e+03 : f32
    %312 = vector.broadcast %cst_74 : f32 to vector<8x128xf32>
    %313 = arith.cmpf ogt, %280, %312 : vector<8x128xf32>
    %314 = arith.andi %311, %313 : vector<8x128xi1>
    %cst_75 = arith.constant 0.000000e+00 : f32
    %315 = vector.broadcast %cst_75 : f32 to vector<8x128xf32>
    %316 = arith.select %314, %309, %315 : vector<8x128xi1>, vector<8x128xf32>
    %cst_76 = arith.constant -5.000000e-01 : f32
    %317 = vector.broadcast %cst_76 : f32 to vector<8x128xf32>
    %318 = arith.cmpf ogt, %280, %317 : vector<8x128xf32>
    %cst_77 = arith.constant 5.000000e-01 : f32
    %319 = vector.broadcast %cst_77 : f32 to vector<8x128xf32>
    %320 = arith.cmpf olt, %280, %319 : vector<8x128xf32>
    %321 = arith.andi %318, %320 : vector<8x128xi1>
    %322 = arith.select %321, %307, %316 : vector<8x128xi1>, vector<8x128xf32>
    %cst_78 = arith.constant 1.000000e+00 : f32
    %323 = vector.broadcast %cst_78 : f32 to vector<8x128xf32>
    %324 = arith.cmpf olt, %299, %323 : vector<8x128xf32>
    %cst_79 = arith.constant 1.000000e+00 : f32
    %325 = vector.broadcast %cst_79 : f32 to vector<8x128xf32>
    %326 = arith.subf %325, %299 : vector<8x128xf32>
    %327 = arith.mulf %326, %322 : vector<8x128xf32>
    %328 = arith.mulf %327, %327 : vector<8x128xf32>
    %cst_80 = arith.constant 0.000000e+00 : f32
    %329 = vector.broadcast %cst_80 : f32 to vector<8x128xf32>
    %330 = arith.select %324, %328, %329 : vector<8x128xi1>, vector<8x128xf32>
    %331 = arith.mulf %330, %330 : vector<8x128xf32>
    %332 = arith.mulf %331, %331 : vector<8x128xf32>
    %333 = arith.addf %272, %332 : vector<8x128xf32>
    %334 = arith.subf %53, %132 : vector<8x128xf32>
    %335 = arith.subf %56, %133 : vector<8x128xf32>
    %336 = arith.subf %59, %134 : vector<8x128xf32>
    %337 = arith.mulf %334, %135 : vector<8x128xf32>
    %338 = arith.mulf %335, %136 : vector<8x128xf32>
    %339 = arith.addf %337, %338 : vector<8x128xf32>
    %340 = arith.mulf %336, %137 : vector<8x128xf32>
    %341 = arith.addf %339, %340 : vector<8x128xf32>
    %342 = arith.mulf %341, %135 : vector<8x128xf32>
    %343 = arith.mulf %341, %136 : vector<8x128xf32>
    %344 = arith.mulf %341, %137 : vector<8x128xf32>
    %345 = arith.subf %334, %342 : vector<8x128xf32>
    %346 = arith.subf %335, %343 : vector<8x128xf32>
    %347 = arith.subf %336, %344 : vector<8x128xf32>
    %348 = arith.mulf %345, %345 : vector<8x128xf32>
    %349 = arith.mulf %346, %346 : vector<8x128xf32>
    %350 = arith.addf %348, %349 : vector<8x128xf32>
    %351 = arith.mulf %347, %347 : vector<8x128xf32>
    %352 = arith.addf %350, %351 : vector<8x128xf32>
    %353 = math.sqrt %352 : vector<8x128xf32>
    %cst_81 = arith.constant 2.000000e+00 : f32
    %354 = vector.broadcast %cst_81 : f32 to vector<8x128xf32>
    %355 = arith.mulf %341, %354 : vector<8x128xf32>
    %356 = arith.mulf %107, %355 : vector<8x128xf32>
    %357 = arith.subf %107, %356 : vector<8x128xf32>
    %cst_82 = arith.constant 9.99999997E-7 : f32
    %358 = vector.broadcast %cst_82 : f32 to vector<8x128xf32>
    %359 = arith.addf %357, %358 : vector<8x128xf32>
    %360 = arith.divf %353, %359 : vector<8x128xf32>
    %cst_83 = arith.constant -0.000000e+00 : f32
    %361 = vector.broadcast %cst_83 : f32 to vector<8x128xf32>
    %362 = arith.mulf %361, %341 : vector<8x128xf32>
    %363 = arith.mulf %362, %341 : vector<8x128xf32>
    %cst_84 = arith.constant 1.000000e+00 : f32
    %364 = vector.broadcast %cst_84 : f32 to vector<8x128xf32>
    %365 = arith.mulf %364, %341 : vector<8x128xf32>
    %366 = arith.subf %363, %365 : vector<8x128xf32>
    %cst_85 = arith.constant 5.000000e-01 : f32
    %367 = vector.broadcast %cst_85 : f32 to vector<8x128xf32>
    %368 = arith.addf %366, %367 : vector<8x128xf32>
    %cst_86 = arith.constant 5.000000e-01 : f32
    %369 = vector.broadcast %cst_86 : f32 to vector<8x128xf32>
    %370 = arith.subf %369, %341 : vector<8x128xf32>
    %cst_87 = arith.constant -5.000000e-01 : f32
    %371 = vector.broadcast %cst_87 : f32 to vector<8x128xf32>
    %372 = arith.cmpf ole, %341, %371 : vector<8x128xf32>
    %cst_88 = arith.constant -1.000000e+03 : f32
    %373 = vector.broadcast %cst_88 : f32 to vector<8x128xf32>
    %374 = arith.cmpf ogt, %341, %373 : vector<8x128xf32>
    %375 = arith.andi %372, %374 : vector<8x128xi1>
    %cst_89 = arith.constant 0.000000e+00 : f32
    %376 = vector.broadcast %cst_89 : f32 to vector<8x128xf32>
    %377 = arith.select %375, %370, %376 : vector<8x128xi1>, vector<8x128xf32>
    %cst_90 = arith.constant -5.000000e-01 : f32
    %378 = vector.broadcast %cst_90 : f32 to vector<8x128xf32>
    %379 = arith.cmpf ogt, %341, %378 : vector<8x128xf32>
    %cst_91 = arith.constant 5.000000e-01 : f32
    %380 = vector.broadcast %cst_91 : f32 to vector<8x128xf32>
    %381 = arith.cmpf olt, %341, %380 : vector<8x128xf32>
    %382 = arith.andi %379, %381 : vector<8x128xi1>
    %383 = arith.select %382, %368, %377 : vector<8x128xi1>, vector<8x128xf32>
    %cst_92 = arith.constant 1.000000e+00 : f32
    %384 = vector.broadcast %cst_92 : f32 to vector<8x128xf32>
    %385 = arith.cmpf olt, %360, %384 : vector<8x128xf32>
    %cst_93 = arith.constant 1.000000e+00 : f32
    %386 = vector.broadcast %cst_93 : f32 to vector<8x128xf32>
    %387 = arith.subf %386, %360 : vector<8x128xf32>
    %388 = arith.mulf %387, %383 : vector<8x128xf32>
    %389 = arith.mulf %388, %388 : vector<8x128xf32>
    %cst_94 = arith.constant 0.000000e+00 : f32
    %390 = vector.broadcast %cst_94 : f32 to vector<8x128xf32>
    %391 = arith.select %385, %389, %390 : vector<8x128xi1>, vector<8x128xf32>
    %392 = arith.mulf %391, %391 : vector<8x128xf32>
    %393 = arith.mulf %392, %392 : vector<8x128xf32>
    %394 = arith.addf %333, %393 : vector<8x128xf32>
    %395 = arith.subf %8, %207 : vector<8x128xf32>
    %396 = arith.subf %11, %208 : vector<8x128xf32>
    %397 = arith.subf %14, %209 : vector<8x128xf32>
    %398 = arith.mulf %395, %210 : vector<8x128xf32>
    %399 = arith.mulf %396, %211 : vector<8x128xf32>
    %400 = arith.addf %398, %399 : vector<8x128xf32>
    %401 = arith.mulf %397, %212 : vector<8x128xf32>
    %402 = arith.addf %400, %401 : vector<8x128xf32>
    %403 = arith.mulf %402, %210 : vector<8x128xf32>
    %404 = arith.mulf %402, %211 : vector<8x128xf32>
    %405 = arith.mulf %402, %212 : vector<8x128xf32>
    %406 = arith.subf %395, %403 : vector<8x128xf32>
    %407 = arith.subf %396, %404 : vector<8x128xf32>
    %408 = arith.subf %397, %405 : vector<8x128xf32>
    %409 = arith.mulf %406, %406 : vector<8x128xf32>
    %410 = arith.mulf %407, %407 : vector<8x128xf32>
    %411 = arith.addf %409, %410 : vector<8x128xf32>
    %412 = arith.mulf %408, %408 : vector<8x128xf32>
    %413 = arith.addf %411, %412 : vector<8x128xf32>
    %414 = math.sqrt %413 : vector<8x128xf32>
    %cst_95 = arith.constant 2.000000e+00 : f32
    %415 = vector.broadcast %cst_95 : f32 to vector<8x128xf32>
    %416 = arith.mulf %402, %415 : vector<8x128xf32>
    %417 = arith.mulf %182, %416 : vector<8x128xf32>
    %418 = arith.subf %182, %417 : vector<8x128xf32>
    %cst_96 = arith.constant 9.99999997E-7 : f32
    %419 = vector.broadcast %cst_96 : f32 to vector<8x128xf32>
    %420 = arith.addf %418, %419 : vector<8x128xf32>
    %421 = arith.divf %414, %420 : vector<8x128xf32>
    %cst_97 = arith.constant -0.000000e+00 : f32
    %422 = vector.broadcast %cst_97 : f32 to vector<8x128xf32>
    %423 = arith.mulf %422, %402 : vector<8x128xf32>
    %424 = arith.mulf %423, %402 : vector<8x128xf32>
    %cst_98 = arith.constant 1.000000e+00 : f32
    %425 = vector.broadcast %cst_98 : f32 to vector<8x128xf32>
    %426 = arith.mulf %425, %402 : vector<8x128xf32>
    %427 = arith.subf %424, %426 : vector<8x128xf32>
    %cst_99 = arith.constant 5.000000e-01 : f32
    %428 = vector.broadcast %cst_99 : f32 to vector<8x128xf32>
    %429 = arith.addf %427, %428 : vector<8x128xf32>
    %cst_100 = arith.constant 5.000000e-01 : f32
    %430 = vector.broadcast %cst_100 : f32 to vector<8x128xf32>
    %431 = arith.subf %430, %402 : vector<8x128xf32>
    %cst_101 = arith.constant -5.000000e-01 : f32
    %432 = vector.broadcast %cst_101 : f32 to vector<8x128xf32>
    %433 = arith.cmpf ole, %402, %432 : vector<8x128xf32>
    %cst_102 = arith.constant -1.000000e+03 : f32
    %434 = vector.broadcast %cst_102 : f32 to vector<8x128xf32>
    %435 = arith.cmpf ogt, %402, %434 : vector<8x128xf32>
    %436 = arith.andi %433, %435 : vector<8x128xi1>
    %cst_103 = arith.constant 0.000000e+00 : f32
    %437 = vector.broadcast %cst_103 : f32 to vector<8x128xf32>
    %438 = arith.select %436, %431, %437 : vector<8x128xi1>, vector<8x128xf32>
    %cst_104 = arith.constant -5.000000e-01 : f32
    %439 = vector.broadcast %cst_104 : f32 to vector<8x128xf32>
    %440 = arith.cmpf ogt, %402, %439 : vector<8x128xf32>
    %cst_105 = arith.constant 5.000000e-01 : f32
    %441 = vector.broadcast %cst_105 : f32 to vector<8x128xf32>
    %442 = arith.cmpf olt, %402, %441 : vector<8x128xf32>
    %443 = arith.andi %440, %442 : vector<8x128xi1>
    %444 = arith.select %443, %429, %438 : vector<8x128xi1>, vector<8x128xf32>
    %cst_106 = arith.constant 1.000000e+00 : f32
    %445 = vector.broadcast %cst_106 : f32 to vector<8x128xf32>
    %446 = arith.cmpf olt, %421, %445 : vector<8x128xf32>
    %cst_107 = arith.constant 1.000000e+00 : f32
    %447 = vector.broadcast %cst_107 : f32 to vector<8x128xf32>
    %448 = arith.subf %447, %421 : vector<8x128xf32>
    %449 = arith.mulf %448, %444 : vector<8x128xf32>
    %450 = arith.mulf %449, %449 : vector<8x128xf32>
    %cst_108 = arith.constant 0.000000e+00 : f32
    %451 = vector.broadcast %cst_108 : f32 to vector<8x128xf32>
    %452 = arith.select %446, %450, %451 : vector<8x128xi1>, vector<8x128xf32>
    %453 = arith.mulf %452, %452 : vector<8x128xf32>
    %454 = arith.mulf %453, %453 : vector<8x128xf32>
    %455 = arith.subf %17, %207 : vector<8x128xf32>
    %456 = arith.subf %20, %208 : vector<8x128xf32>
    %457 = arith.subf %23, %209 : vector<8x128xf32>
    %458 = arith.mulf %455, %210 : vector<8x128xf32>
    %459 = arith.mulf %456, %211 : vector<8x128xf32>
    %460 = arith.addf %458, %459 : vector<8x128xf32>
    %461 = arith.mulf %457, %212 : vector<8x128xf32>
    %462 = arith.addf %460, %461 : vector<8x128xf32>
    %463 = arith.mulf %462, %210 : vector<8x128xf32>
    %464 = arith.mulf %462, %211 : vector<8x128xf32>
    %465 = arith.mulf %462, %212 : vector<8x128xf32>
    %466 = arith.subf %455, %463 : vector<8x128xf32>
    %467 = arith.subf %456, %464 : vector<8x128xf32>
    %468 = arith.subf %457, %465 : vector<8x128xf32>
    %469 = arith.mulf %466, %466 : vector<8x128xf32>
    %470 = arith.mulf %467, %467 : vector<8x128xf32>
    %471 = arith.addf %469, %470 : vector<8x128xf32>
    %472 = arith.mulf %468, %468 : vector<8x128xf32>
    %473 = arith.addf %471, %472 : vector<8x128xf32>
    %474 = math.sqrt %473 : vector<8x128xf32>
    %cst_109 = arith.constant 2.000000e+00 : f32
    %475 = vector.broadcast %cst_109 : f32 to vector<8x128xf32>
    %476 = arith.mulf %462, %475 : vector<8x128xf32>
    %477 = arith.mulf %182, %476 : vector<8x128xf32>
    %478 = arith.subf %182, %477 : vector<8x128xf32>
    %cst_110 = arith.constant 9.99999997E-7 : f32
    %479 = vector.broadcast %cst_110 : f32 to vector<8x128xf32>
    %480 = arith.addf %478, %479 : vector<8x128xf32>
    %481 = arith.divf %474, %480 : vector<8x128xf32>
    %cst_111 = arith.constant -0.000000e+00 : f32
    %482 = vector.broadcast %cst_111 : f32 to vector<8x128xf32>
    %483 = arith.mulf %482, %462 : vector<8x128xf32>
    %484 = arith.mulf %483, %462 : vector<8x128xf32>
    %cst_112 = arith.constant 1.000000e+00 : f32
    %485 = vector.broadcast %cst_112 : f32 to vector<8x128xf32>
    %486 = arith.mulf %485, %462 : vector<8x128xf32>
    %487 = arith.subf %484, %486 : vector<8x128xf32>
    %cst_113 = arith.constant 5.000000e-01 : f32
    %488 = vector.broadcast %cst_113 : f32 to vector<8x128xf32>
    %489 = arith.addf %487, %488 : vector<8x128xf32>
    %cst_114 = arith.constant 5.000000e-01 : f32
    %490 = vector.broadcast %cst_114 : f32 to vector<8x128xf32>
    %491 = arith.subf %490, %462 : vector<8x128xf32>
    %cst_115 = arith.constant -5.000000e-01 : f32
    %492 = vector.broadcast %cst_115 : f32 to vector<8x128xf32>
    %493 = arith.cmpf ole, %462, %492 : vector<8x128xf32>
    %cst_116 = arith.constant -1.000000e+03 : f32
    %494 = vector.broadcast %cst_116 : f32 to vector<8x128xf32>
    %495 = arith.cmpf ogt, %462, %494 : vector<8x128xf32>
    %496 = arith.andi %493, %495 : vector<8x128xi1>
    %cst_117 = arith.constant 0.000000e+00 : f32
    %497 = vector.broadcast %cst_117 : f32 to vector<8x128xf32>
    %498 = arith.select %496, %491, %497 : vector<8x128xi1>, vector<8x128xf32>
    %cst_118 = arith.constant -5.000000e-01 : f32
    %499 = vector.broadcast %cst_118 : f32 to vector<8x128xf32>
    %500 = arith.cmpf ogt, %462, %499 : vector<8x128xf32>
    %cst_119 = arith.constant 5.000000e-01 : f32
    %501 = vector.broadcast %cst_119 : f32 to vector<8x128xf32>
    %502 = arith.cmpf olt, %462, %501 : vector<8x128xf32>
    %503 = arith.andi %500, %502 : vector<8x128xi1>
    %504 = arith.select %503, %489, %498 : vector<8x128xi1>, vector<8x128xf32>
    %cst_120 = arith.constant 1.000000e+00 : f32
    %505 = vector.broadcast %cst_120 : f32 to vector<8x128xf32>
    %506 = arith.cmpf olt, %481, %505 : vector<8x128xf32>
    %cst_121 = arith.constant 1.000000e+00 : f32
    %507 = vector.broadcast %cst_121 : f32 to vector<8x128xf32>
    %508 = arith.subf %507, %481 : vector<8x128xf32>
    %509 = arith.mulf %508, %504 : vector<8x128xf32>
    %510 = arith.mulf %509, %509 : vector<8x128xf32>
    %cst_122 = arith.constant 0.000000e+00 : f32
    %511 = vector.broadcast %cst_122 : f32 to vector<8x128xf32>
    %512 = arith.select %506, %510, %511 : vector<8x128xi1>, vector<8x128xf32>
    %513 = arith.mulf %512, %512 : vector<8x128xf32>
    %514 = arith.mulf %513, %513 : vector<8x128xf32>
    %515 = arith.addf %454, %514 : vector<8x128xf32>
    %516 = arith.subf %26, %207 : vector<8x128xf32>
    %517 = arith.subf %29, %208 : vector<8x128xf32>
    %518 = arith.subf %32, %209 : vector<8x128xf32>
    %519 = arith.mulf %516, %210 : vector<8x128xf32>
    %520 = arith.mulf %517, %211 : vector<8x128xf32>
    %521 = arith.addf %519, %520 : vector<8x128xf32>
    %522 = arith.mulf %518, %212 : vector<8x128xf32>
    %523 = arith.addf %521, %522 : vector<8x128xf32>
    %524 = arith.mulf %523, %210 : vector<8x128xf32>
    %525 = arith.mulf %523, %211 : vector<8x128xf32>
    %526 = arith.mulf %523, %212 : vector<8x128xf32>
    %527 = arith.subf %516, %524 : vector<8x128xf32>
    %528 = arith.subf %517, %525 : vector<8x128xf32>
    %529 = arith.subf %518, %526 : vector<8x128xf32>
    %530 = arith.mulf %527, %527 : vector<8x128xf32>
    %531 = arith.mulf %528, %528 : vector<8x128xf32>
    %532 = arith.addf %530, %531 : vector<8x128xf32>
    %533 = arith.mulf %529, %529 : vector<8x128xf32>
    %534 = arith.addf %532, %533 : vector<8x128xf32>
    %535 = math.sqrt %534 : vector<8x128xf32>
    %cst_123 = arith.constant 2.000000e+00 : f32
    %536 = vector.broadcast %cst_123 : f32 to vector<8x128xf32>
    %537 = arith.mulf %523, %536 : vector<8x128xf32>
    %538 = arith.mulf %182, %537 : vector<8x128xf32>
    %539 = arith.subf %182, %538 : vector<8x128xf32>
    %cst_124 = arith.constant 9.99999997E-7 : f32
    %540 = vector.broadcast %cst_124 : f32 to vector<8x128xf32>
    %541 = arith.addf %539, %540 : vector<8x128xf32>
    %542 = arith.divf %535, %541 : vector<8x128xf32>
    %cst_125 = arith.constant -0.000000e+00 : f32
    %543 = vector.broadcast %cst_125 : f32 to vector<8x128xf32>
    %544 = arith.mulf %543, %523 : vector<8x128xf32>
    %545 = arith.mulf %544, %523 : vector<8x128xf32>
    %cst_126 = arith.constant 1.000000e+00 : f32
    %546 = vector.broadcast %cst_126 : f32 to vector<8x128xf32>
    %547 = arith.mulf %546, %523 : vector<8x128xf32>
    %548 = arith.subf %545, %547 : vector<8x128xf32>
    %cst_127 = arith.constant 5.000000e-01 : f32
    %549 = vector.broadcast %cst_127 : f32 to vector<8x128xf32>
    %550 = arith.addf %548, %549 : vector<8x128xf32>
    %cst_128 = arith.constant 5.000000e-01 : f32
    %551 = vector.broadcast %cst_128 : f32 to vector<8x128xf32>
    %552 = arith.subf %551, %523 : vector<8x128xf32>
    %cst_129 = arith.constant -5.000000e-01 : f32
    %553 = vector.broadcast %cst_129 : f32 to vector<8x128xf32>
    %554 = arith.cmpf ole, %523, %553 : vector<8x128xf32>
    %cst_130 = arith.constant -1.000000e+03 : f32
    %555 = vector.broadcast %cst_130 : f32 to vector<8x128xf32>
    %556 = arith.cmpf ogt, %523, %555 : vector<8x128xf32>
    %557 = arith.andi %554, %556 : vector<8x128xi1>
    %cst_131 = arith.constant 0.000000e+00 : f32
    %558 = vector.broadcast %cst_131 : f32 to vector<8x128xf32>
    %559 = arith.select %557, %552, %558 : vector<8x128xi1>, vector<8x128xf32>
    %cst_132 = arith.constant -5.000000e-01 : f32
    %560 = vector.broadcast %cst_132 : f32 to vector<8x128xf32>
    %561 = arith.cmpf ogt, %523, %560 : vector<8x128xf32>
    %cst_133 = arith.constant 5.000000e-01 : f32
    %562 = vector.broadcast %cst_133 : f32 to vector<8x128xf32>
    %563 = arith.cmpf olt, %523, %562 : vector<8x128xf32>
    %564 = arith.andi %561, %563 : vector<8x128xi1>
    %565 = arith.select %564, %550, %559 : vector<8x128xi1>, vector<8x128xf32>
    %cst_134 = arith.constant 1.000000e+00 : f32
    %566 = vector.broadcast %cst_134 : f32 to vector<8x128xf32>
    %567 = arith.cmpf olt, %542, %566 : vector<8x128xf32>
    %cst_135 = arith.constant 1.000000e+00 : f32
    %568 = vector.broadcast %cst_135 : f32 to vector<8x128xf32>
    %569 = arith.subf %568, %542 : vector<8x128xf32>
    %570 = arith.mulf %569, %565 : vector<8x128xf32>
    %571 = arith.mulf %570, %570 : vector<8x128xf32>
    %cst_136 = arith.constant 0.000000e+00 : f32
    %572 = vector.broadcast %cst_136 : f32 to vector<8x128xf32>
    %573 = arith.select %567, %571, %572 : vector<8x128xi1>, vector<8x128xf32>
    %574 = arith.mulf %573, %573 : vector<8x128xf32>
    %575 = arith.mulf %574, %574 : vector<8x128xf32>
    %576 = arith.addf %515, %575 : vector<8x128xf32>
    %cst_137 = arith.constant 5.000000e-01 : f32
    %577 = vector.broadcast %cst_137 : f32 to vector<8x128xf32>
    %578 = arith.cmpf ogt, %62, %577 : vector<8x128xf32>
    %579 = arith.addf %394, %576 : vector<8x128xf32>
    %cst_138 = arith.constant 0.000000e+00 : f32
    %580 = vector.broadcast %cst_138 : f32 to vector<8x128xf32>
    %581 = arith.select %578, %579, %580 : vector<8x128xi1>, vector<8x128xf32>
    %582 = arith.addf %3, %581 : vector<8x128xf32>
    %c1_i32 = arith.constant 1 : i32
    %c0_139 = arith.constant 0 : index
    %c0_140 = arith.constant 0 : index
    %c0_141 = arith.constant 0 : index
    %c0_142 = arith.constant 0 : index
    %583 = vector.load %arg6[%c0_139, %c0_140, %c0_141, %c0_142] : memref<1x1x8x128xf32, #tpu.memory_space<vmem>>, vector<1x1x8x128xf32>
    %584 = vector.shape_cast %583 : vector<1x1x8x128xf32> to vector<8x128xf32>
    %585 = arith.addf %584, %582 : vector<8x128xf32>
    %c0_143 = arith.constant 0 : index
    %c0_144 = arith.constant 0 : index
    %c0_145 = arith.constant 0 : index
    %c0_146 = arith.constant 0 : index
    %586 = vector.load %arg6[%c0_143, %c0_144, %c0_145, %c0_146] : memref<1x1x8x128xf32, #tpu.memory_space<vmem>>, vector<1x1x8x128xf32>
    %587 = vector.shape_cast %586 : vector<1x1x8x128xf32> to vector<8x128xf32>
    %588 = vector.shape_cast %585 : vector<8x128xf32> to vector<1x1x8x128xf32>
    tpu.vector_store %arg6[%c0_143, %c0_144, %c0_145, %c0_146], %588 {strides = array<i32>} : memref<1x1x8x128xf32, #tpu.memory_space<vmem>>, vector<1x1x8x128xf32>,
    return
  }
  func.func @transform_0(%arg0: i32, %arg1: i32, %arg2: i32) -> (i32, i32, i32, i32) {
    %c1_i32 = arith.constant 1 : i32
    %0 = arith.muli %arg0, %c1_i32 : i32
    %1 = arith.addi %0, %arg2 : i32
    %c0_i32 = arith.constant 0 : i32
    %c0_i32_0 = arith.constant 0 : i32
    %c0_i32_1 = arith.constant 0 : i32
    return %arg1, %c0_i32, %1, %c0_i32_0 : i32, i32, i32, i32
  }
  func.func @transform_1(%arg0: i32, %arg1: i32, %arg2: i32) -> (i32, i32, i32, i32) {
    %c1_i32 = arith.constant 1 : i32
    %0 = arith.muli %arg0, %c1_i32 : i32
    %1 = arith.addi %0, %arg2 : i32
    %c0_i32 = arith.constant 0 : i32
    %c0_i32_0 = arith.constant 0 : i32
    %c0_i32_1 = arith.constant 0 : i32
    return %arg1, %c0_i32, %1, %c0_i32_0 : i32, i32, i32, i32
  }
  func.func @transform_2(%arg0: i32, %arg1: i32, %arg2: i32) -> (i32, i32, i32) {
    %c1_i32 = arith.constant 1 : i32
    %0 = arith.muli %arg0, %c1_i32 : i32
    %1 = arith.addi %0, %arg2 : i32
    %c0_i32 = arith.constant 0 : i32
    %c0_i32_0 = arith.constant 0 : i32
    return %arg1, %1, %c0_i32 : i32, i32, i32
  }
  func.func @transform_3(%arg0: i32, %arg1: i32, %arg2: i32) -> (i32, i32, i32, i32) {
    %c0_i32 = arith.constant 0 : i32
    %c0_i32_0 = arith.constant 0 : i32
    %c0_i32_1 = arith.constant 0 : i32
    return %arg0, %arg1, %c0_i32, %c0_i32_0 : i32, i32, i32, i32
  }
}

</mosaic_0001>

<llo_original>
// kernel: tpu_custom_call.1
$region0: #{tpu_custom_call.1}
  #allocation0 [shape = 'u32[]', space=smem, size = 0x4, offset = 0x4, fixed_abs, tag = 'smem constant byte address 0x4 - core index']
  #allocation1 [shape = 'u32[144,128]{1,0:T(1,128)}', space=vmem, size = 0x12000, scoped, tag = 'internal scratch']
  %s0 = inlined_call_operand.hbm [shape: f32[2,9,8,128], index: 0, kind: input, shape index: {}]
  %s1 = inlined_call_operand.hbm [shape: f32[2,9,8,128], index: 1, kind: input, shape index: {}]
  %s2 = inlined_call_operand.hbm [shape: f32[2,8,128], index: 2, kind: input, shape index: {}]
  %s3 = inlined_call_operand.hbm [shape: f32[1,2,8,128], index: 3, kind: output, shape index: {}]
  %s4 = sld [smem:[#allocation0]]
  $region61: #{tpu_custom_call.1} parent=0
    _
  %s6 = ssub.s32 1, %s4
  %s7 = scalar_select 0, %s6, %s4
  $region1: #{tpu_custom_call.1} parent=0
    #allocation2 [shape = 'u8[73728]{0}', space=vmem, size = 0x12000, scoped, tag = 'input window, operand 0']
    #allocation3 [shape = 's32[2]{0}', space=sflag, size = 0x8, scoped, tag = 'scoped memory for tpu_custom_call.1']
    #allocation4 [shape = 's32[2]{0}', space=sflag, size = 0x8, scoped, tag = 'scoped memory for tpu_custom_call.1']
    #allocation5 [shape = 'u8[73728]{0}', space=vmem, size = 0x12000, scoped, tag = 'input window, operand 1']
    #allocation6 [shape = 's32[2]{0}', space=sflag, size = 0x8, scoped, tag = 'scoped memory for tpu_custom_call.1']
    #allocation7 [shape = 'u8[8192]{0}', space=vmem, size = 0x2000, scoped, tag = 'input window, operand 2']
    #allocation8 [shape = 'u8[8192]{0}', space=vmem, size = 0x2000, scoped, tag = 'output window, operand 0']
    %8 = vsyncpa [#allocation3], 0
    %s9 = scalar_lea.sflag [#allocation3], 1
    %10 = vsyncpa %s9, 0
    %11 = vsyncpa [#allocation6], 0
    %s12 = scalar_lea.sflag [#allocation6], 1
    %13 = vsyncpa %s12, 0
    %14 = vsyncpa [#allocation4], 0
    %s15 = scalar_lea.sflag [#allocation4], 1
    %16 = vsyncpa %s15, 0
    loop: start=0, step=1, limit=4
    $region2: #{tpu_custom_call.1} parent=1 // loop_pre_header
      _
    $region3: #{tpu_custom_call.1} parent=1 // loop_header
      %s18 = sphi 0, %s22
      %p19 = scmp.ge.s32.totalorder %s18, 4
      %s25 = sphi 0, %s44
      %s26 = sphi 0, %s40
      %s27 = sphi 0, %s36
      %s28 = sphi 0, %s25
      %s29 = sphi 0, %s26
      %s30 = sphi 0, %s27
      %s31 = sphi 0, %s28
      %s32 = sphi 0, %s29
      %s33 = sphi 0, %s30
      %s51 = sphi 0, %s53
      %s54 = sphi 0, %s51
      %s55 = sphi 0, %s54
      %s71 = sphi 0, %s55
      %s81 = sphi 0, %s83
      %s84 = sphi 0, %s81
      %s85 = sphi 0, %s84
      %s101 = sphi 0, %s85
      %s111 = sphi 0, %s113
      %s114 = sphi 0, %s111
      %s115 = sphi 0, %s114
      %s131 = sphi 0, %s115
      %s139 = sphi 0, %s141
      %s142 = sphi 0, %s139
      %s143 = sphi 0, %s142
      %s159 = sphi 0, %s143
    $region4: #{tpu_custom_call.1} parent=1 // loop_header_branch
      %21 = sbr.rel (%p19) target = $region8
    $region5: #{tpu_custom_call.1} parent=1 // loop_body
      %s23 = ssub.s32 %s18, 1
      %s24 = ssub.s32 %s18, 2
      %s34 = sadd.s32 1, %s27
      %p35 = scmp.ge.s32.totalorder %s34, 1
      %s36 = scalar_select %p35, 0, %s34
      %s37 = sadd.s32 1, %s26
      %s38 = scalar_select %p35, %s37, %s26
      %p39 = scmp.ge.s32.totalorder %s38, 2
      %s40 = scalar_select %p39, 0, %s38
      %s41 = sadd.s32 1, %s25
      %s42 = scalar_select %p39, %s41, %s25
      %p43 = scmp.ge.s32.totalorder %s42, 1
      %s44 = scalar_select %p43, 0, %s42
      %s45 = sadd.s32 %s25, %s27
      %s46 = sadd.s32 %s44, %s36
      %s47 = ssub.s32 %s26, %s40
      %s48 = ssub.s32 %s45, %s46
      %s49 = sor.u32 %s47, %s48
      %p50 = scmp.eq.s32.totalorder %s49, 0
      %s52 = sadd.s32 %s51, 1
      %s53 = scalar_select %p50, %s51, %s52
      %p56 = pneg %p50
      %p57 = scmp.eq.s32.totalorder %s18, 1
      %p58 = por %p56, %p57
      %p59 = scmp.ne.s32.totalorder %s51, %s54
      %p60 = scmp.eq.s32.totalorder %s18, 0
      %p61 = por %p59, %p60
      %p62 = scmp.ne.s32.totalorder %s51, %s54
      %p63 = scmp.eq.s32.totalorder %s23, 1
      %p64 = por %p62, %p63
      %p65 = scmp.ne.s32.totalorder %s54, %s55
      %p66 = scmp.eq.s32.totalorder %s23, 0
      %p67 = por %p65, %p66
      %p68 = scmp.ne.s32.totalorder %s54, %s55
      %p69 = scmp.eq.s32.totalorder %s24, 1
      %p70 = por %p68, %p69
      %p72 = scmp.ne.s32.totalorder %s55, %s71
      %p73 = scmp.eq.s32.totalorder %s24, 0
      %p74 = por %p72, %p73
      %s75 = sadd.s32 %s25, %s27
      %s76 = sadd.s32 %s44, %s36
      %s77 = ssub.s32 %s26, %s40
      %s78 = ssub.s32 %s75, %s76
      %s79 = sor.u32 %s77, %s78
      %p80 = scmp.eq.s32.totalorder %s79, 0
      %s82 = sadd.s32 %s81, 1
      %s83 = scalar_select %p80, %s81, %s82
      %p86 = pneg %p80
      %p87 = scmp.eq.s32.totalorder %s18, 1
      %p88 = por %p86, %p87
      %p89 = scmp.ne.s32.totalorder %s81, %s84
      %p90 = scmp.eq.s32.totalorder %s18, 0
      %p91 = por %p89, %p90
      %p92 = scmp.ne.s32.totalorder %s81, %s84
      %p93 = scmp.eq.s32.totalorder %s23, 1
      %p94 = por %p92, %p93
      %p95 = scmp.ne.s32.totalorder %s84, %s85
      %p96 = scmp.eq.s32.totalorder %s23, 0
      %p97 = por %p95, %p96
      %p98 = scmp.ne.s32.totalorder %s84, %s85
      %p99 = scmp.eq.s32.totalorder %s24, 1
      %p100 = por %p98, %p99
      %p102 = scmp.ne.s32.totalorder %s85, %s101
      %p103 = scmp.eq.s32.totalorder %s24, 0
      %p104 = por %p102, %p103
      %s105 = sadd.s32 %s25, %s27
      %s106 = sadd.s32 %s44, %s36
      %s107 = ssub.s32 %s26, %s40
      %s108 = ssub.s32 %s105, %s106
      %s109 = sor.u32 %s107, %s108
      %p110 = scmp.eq.s32.totalorder %s109, 0
      %s112 = sadd.s32 %s111, 1
      %s113 = scalar_select %p110, %s111, %s112
      %p116 = pneg %p110
      %p117 = scmp.eq.s32.totalorder %s18, 1
      %p118 = por %p116, %p117
      %p119 = scmp.ne.s32.totalorder %s111, %s114
      %p120 = scmp.eq.s32.totalorder %s18, 0
      %p121 = por %p119, %p120
      %p122 = scmp.ne.s32.totalorder %s111, %s114
      %p123 = scmp.eq.s32.totalorder %s23, 1
      %p124 = por %p122, %p123
      %p125 = scmp.ne.s32.totalorder %s114, %s115
      %p126 = scmp.eq.s32.totalorder %s23, 0
      %p127 = por %p125, %p126
      %p128 = scmp.ne.s32.totalorder %s114, %s115
      %p129 = scmp.eq.s32.totalorder %s24, 1
      %p130 = por %p128, %p129
      %p132 = scmp.ne.s32.totalorder %s115, %s131
      %p133 = scmp.eq.s32.totalorder %s24, 0
      %p134 = por %p132, %p133
      %s135 = ssub.s32 %s25, %s44
      %s136 = ssub.s32 %s26, %s40
      %s137 = sor.u32 %s135, %s136
      %p138 = scmp.eq.s32.totalorder %s137, 0
      %s140 = sadd.s32 %s139, 1
      %s141 = scalar_select %p138, %s139, %s140
      %p144 = pneg %p138
      %p145 = scmp.eq.s32.totalorder %s18, 1
      %p146 = por %p144, %p145
      %p147 = scmp.ne.s32.totalorder %s139, %s142
      %p148 = scmp.eq.s32.totalorder %s18, 0
      %p149 = por %p147, %p148
      %p150 = scmp.ne.s32.totalorder %s139, %s142
      %p151 = scmp.eq.s32.totalorder %s23, 1
      %p152 = por %p150, %p151
      %p153 = scmp.ne.s32.totalorder %s142, %s143
      %p154 = scmp.eq.s32.totalorder %s23, 0
      %p155 = por %p153, %p154
      %p156 = scmp.ne.s32.totalorder %s142, %s143
      %p157 = scmp.eq.s32.totalorder %s24, 1
      %p158 = por %p156, %p157
      %p160 = scmp.ne.s32.totalorder %s143, %s159
      %p161 = scmp.eq.s32.totalorder %s24, 0
      %p162 = por %p160, %p161
      %p163 = scmp.le.s32.totalorder 1, %s18
      %p164 = scmp.lt.s32.totalorder %s18, 3
      %p165 = pnand %p163, %p164
      %p166 = pneg %p165
      // Predicated region
      $region9: #{tpu_custom_call.1} parent=5 // pred_check
        _
      $region10: #{tpu_custom_call.1} parent=5 // pred_check_branch
        %168 = sbr.rel (%p165) target = $region12
      $region11: #{tpu_custom_call.1} parent=5 // pred_region
        %s169 = ssub.s32 %s18, 1
      $region12: #{tpu_custom_call.1} parent=5 // pred_fallthru
        _
      %p170 = scmp.lt.s32.totalorder %s18, 2
      // Predicated region
      $region13: #{tpu_custom_call.1} parent=5 // pred_check
        %p171 = pneg %p170
      $region14: #{tpu_custom_call.1} parent=5 // pred_check_branch
        %173 = sbr.rel (%p171) target = $region16
      $region15: #{tpu_custom_call.1} parent=5 // pred_region
        // Predicated region
        $region17: #{tpu_custom_call.1} parent=15 // pred_check
          %p174 = pneg %p61
        $region18: #{tpu_custom_call.1} parent=15 // pred_check_branch
          %176 = sbr.rel (%p174) target = $region20
        $region19: #{tpu_custom_call.1} parent=15 // pred_region
          %s177 = sand.u32 %s51, 1
          %s178 = scalar_lea.sflag [#allocation3], %s177
          %s179 = sand.u32 %s51, 1
          %s180 = smul.addr %s179, 72
          %s181 = scalar_lea.vmem [#allocation2], %s180
          %s182 = sadd.s32 %s25, %s27
          %s184 = ssub.s32 1152, 1152
          %185 = vsyncadd %s178, %s184
          %s186 = smul.addr %s26, 9
          %s187 = sadd.s32 %s182, %s186
          %s188 = smul.addr %s187, 128
          %s189 = scalar_lea.hbm %s0, %s188
          %s190 = sshll.u32 %s181, 4
          %s191 = int_to_ptr.vmem [resolvable:$true] %s190
          %196 = dma.hbm_to_vmem [thread:$0]  %s189, 1152, %s191, %s178, 128, 128, 8
        $region20: #{tpu_custom_call.1} parent=15 // pred_fallthru
          _
        // Predicated region
        $region21: #{tpu_custom_call.1} parent=15 // pred_check
          %p197 = pneg %p91
        $region22: #{tpu_custom_call.1} parent=15 // pred_check_branch
          %199 = sbr.rel (%p197) target = $region24
        $region23: #{tpu_custom_call.1} parent=15 // pred_region
          %s200 = sand.u32 %s18, 1
          %s201 = scalar_lea.sflag [#allocation6], %s200
          %s202 = sand.u32 %s81, 1
          %s203 = smul.addr %s202, 72
          %s204 = scalar_lea.vmem [#allocation5], %s203
          %s205 = sadd.s32 %s25, %s27
          %s207 = ssub.s32 1152, 1152
          %208 = vsyncadd %s201, %s207
          %s209 = smul.addr %s26, 9
          %s210 = sadd.s32 %s205, %s209
          %s211 = smul.addr %s210, 128
          %s212 = scalar_lea.hbm %s1, %s211
          %s213 = sshll.u32 %s204, 4
          %s214 = int_to_ptr.vmem [resolvable:$true] %s213
          %219 = dma.hbm_to_vmem [thread:$0]  %s212, 1152, %s214, %s201, 128, 128, 8
        $region24: #{tpu_custom_call.1} parent=15 // pred_fallthru
          _
        // Predicated region
        $region25: #{tpu_custom_call.1} parent=15 // pred_check
          %p220 = pneg %p121
        $region26: #{tpu_custom_call.1} parent=15 // pred_check_branch
          %222 = sbr.rel (%p220) target = $region28
        $region27: #{tpu_custom_call.1} parent=15 // pred_region
          %s223 = sand.u32 %s18, 1
          %s224 = scalar_lea.sflag [#allocation6], %s223
          %s225 = sand.u32 %s111, 1
          %s226 = smul.addr %s225, 8
          %s227 = scalar_lea.vmem [#allocation7], %s226
          %s228 = sadd.s32 %s25, %s27
          %s230 = ssub.s32 128, 128
          %231 = vsyncadd %s224, %s230
          %s232 = sadd.s32 %s228, %s26
          %s233 = smul.addr %s232, 128
          %s234 = scalar_lea.hbm %s2, %s233
          %s236 = sshll.u32 %s227, 4
          %s237 = int_to_ptr.vmem [resolvable:$true] %s236
          %239 = dma.hbm_to_vmem [thread:$0]  %s234, 128, %s237, %s224
        $region28: #{tpu_custom_call.1} parent=15 // pred_fallthru
          _
      $region16: #{tpu_custom_call.1} parent=5 // pred_fallthru
        _
      %p240 = scmp.le.s32.totalorder 1, %s18
      %p241 = scmp.lt.s32.totalorder %s18, 3
      %p242 = pnand %p240, %p241
      %p243 = pneg %p242
      // Predicated region
      $region29: #{tpu_custom_call.1} parent=5 // pred_check
        _
      $region30: #{tpu_custom_call.1} parent=5 // pred_check_branch
        %245 = sbr.rel (%p242) target = $region32
      $region31: #{tpu_custom_call.1} parent=5 // pred_region
        %s246 = ssub.s32 %s18, 1
        %s247 = sand.u32 %s54, 1
        %s248 = scalar_lea.sflag [#allocation3], %s247
        %s249 = sand.u32 %s54, 1
        %s250 = smul.addr %s249, 72
        %s251 = scalar_lea.vmem [#allocation2], %s250
        // Predicated region
        $region33: #{tpu_custom_call.1} parent=31 // pred_check
          %p252 = pneg %p67
        $region34: #{tpu_custom_call.1} parent=31 // pred_check_branch
          %254 = sbr.rel (%p252) target = $region36
        $region35: #{tpu_custom_call.1} parent=31 // pred_region
          %255 = dma.done %s248, 1152
        $region36: #{tpu_custom_call.1} parent=31 // pred_fallthru
          _
        %s256 = sand.u32 %s23, 1
        %s257 = scalar_lea.sflag [#allocation6], %s256
        %s258 = sand.u32 %s84, 1
        %s259 = smul.addr %s258, 72
        %s260 = scalar_lea.vmem [#allocation5], %s259
        // Predicated region
        $region37: #{tpu_custom_call.1} parent=31 // pred_check
          %p261 = pneg %p97
        $region38: #{tpu_custom_call.1} parent=31 // pred_check_branch
          %263 = sbr.rel (%p261) target = $region40
        $region39: #{tpu_custom_call.1} parent=31 // pred_region
          %264 = dma.done %s257, 1152
        $region40: #{tpu_custom_call.1} parent=31 // pred_fallthru
          _
        %s265 = sand.u32 %s23, 1
        %s266 = scalar_lea.sflag [#allocation6], %s265
        %s267 = sand.u32 %s114, 1
        %s268 = smul.addr %s267, 8
        %s269 = scalar_lea.vmem [#allocation7], %s268
        // Predicated region
        $region41: #{tpu_custom_call.1} parent=31 // pred_check
          %p270 = pneg %p127
        $region42: #{tpu_custom_call.1} parent=31 // pred_check_branch
          %272 = sbr.rel (%p270) target = $region44
        $region43: #{tpu_custom_call.1} parent=31 // pred_region
          %273 = dma.done %s266, 128
        $region44: #{tpu_custom_call.1} parent=31 // pred_fallthru
          _
        %s274 = sand.u32 %s54, 1
        %s275 = scalar_lea.sflag [#allocation3], %s274
        %s276 = sand.u32 %s54, 1
        %s277 = smul.addr %s276, 72
        %s278 = scalar_lea.vmem [#allocation2], %s277
        %p279 = pneg %p67
        %p280 = pneg %p64
        %s281 = sand.u32 %s23, 1
        %s282 = scalar_lea.sflag [#allocation6], %s281
        %s283 = sand.u32 %s84, 1
        %s284 = smul.addr %s283, 72
        %s285 = scalar_lea.vmem [#allocation5], %s284
        %p286 = pneg %p97
        %p287 = pneg %p94
        %s288 = sand.u32 %s23, 1
        %s289 = scalar_lea.sflag [#allocation6], %s288
        %s290 = sand.u32 %s114, 1
        %s291 = smul.addr %s290, 8
        %s292 = scalar_lea.vmem [#allocation7], %s291
        %p293 = pneg %p127
        %p294 = pneg %p124
        %p295 = pneg %p155
        %p296 = pneg %p152
        %s297 = sand.u32 %s142, 1
        %s298 = scalar_lea.sflag [#allocation4], %s297
        %s299 = sand.u32 %s142, 1
        %s300 = smul.addr %s299, 8
        %s301 = scalar_lea.vmem [#allocation8], %s300
        %s302 = sadd.s32 %s28, %s30
        %s303 = sadd.s32 %s28, %s30
        %s304 = sadd.s32 %s28, %s30
        %p305 = scmp.eq.s32.totalorder %s30, 0
        // Predicated region
        $region45: #{tpu_custom_call.1} parent=31 // pred_check
          %p306 = pneg %p305
        $region46: #{tpu_custom_call.1} parent=31 // pred_check_branch
          %308 = sbr.rel (%p306) target = $region48
        $region47: #{tpu_custom_call.1} parent=31 // pred_region
          %309 = vst [vmem:[%s301] sm:$0xff] 0.0
        $region48: #{tpu_custom_call.1} parent=31 // pred_fallthru
          _
        %v310 = vld [vmem:[%s251] sm:$0xff]
        %s311 = sadd.s32 0, 8
        %s312 = scalar_lea.vmem %s251, %s311 [#allocation2]
        %v313 = vld [vmem:[%s312] sm:$0xff]
        %s314 = sadd.s32 0, 16
        %s315 = scalar_lea.vmem %s251, %s314 [#allocation2]
        %v316 = vld [vmem:[%s315] sm:$0xff]
        %s317 = sadd.s32 0, 24
        %s318 = scalar_lea.vmem %s251, %s317 [#allocation2]
        %v319 = vld [vmem:[%s318] sm:$0xff]
        %s320 = sadd.s32 0, 32
        %s321 = scalar_lea.vmem %s251, %s320 [#allocation2]
        %v322 = vld [vmem:[%s321] sm:$0xff]
        %s323 = sadd.s32 0, 40
        %s324 = scalar_lea.vmem %s251, %s323 [#allocation2]
        %v325 = vld [vmem:[%s324] sm:$0xff]
        %s326 = sadd.s32 0, 48
        %s327 = scalar_lea.vmem %s251, %s326 [#allocation2]
        %v328 = vld [vmem:[%s327] sm:$0xff]
        %s329 = sadd.s32 0, 56
        %s330 = scalar_lea.vmem %s251, %s329 [#allocation2]
        %v331 = vld [vmem:[%s330] sm:$0xff]
        %s332 = sadd.s32 0, 64
        %s333 = scalar_lea.vmem %s251, %s332 [#allocation2]
        %v334 = vld [vmem:[%s333] sm:$0xff]
        %v335 = vld [vmem:[%s260] sm:$0xff]
        %s336 = scalar_lea.vmem %s260, %s311 [#allocation5]
        %v337 = vld [vmem:[%s336] sm:$0xff]
        %s338 = scalar_lea.vmem %s260, %s314 [#allocation5]
        %v339 = vld [vmem:[%s338] sm:$0xff]
        %s340 = scalar_lea.vmem %s260, %s317 [#allocation5]
        %v341 = vld [vmem:[%s340] sm:$0xff]
        %s342 = scalar_lea.vmem %s260, %s320 [#allocation5]
        %v343 = vld [vmem:[%s342] sm:$0xff]
        %s344 = scalar_lea.vmem %s260, %s323 [#allocation5]
        %v345 = vld [vmem:[%s344] sm:$0xff]
        %s346 = scalar_lea.vmem %s260, %s326 [#allocation5]
        %v347 = vld [vmem:[%s346] sm:$0xff]
        %s348 = scalar_lea.vmem %s260, %s329 [#allocation5]
        %v349 = vld [vmem:[%s348] sm:$0xff]
        %s350 = scalar_lea.vmem %s260, %s332 [#allocation5]
        %v351 = vld [vmem:[%s350] sm:$0xff]
        %v352 = vld [vmem:[%s269] sm:$0xff]
        %v353 = vsub.f32 %v319, %v310
        %v354 = vsub.f32 %v322, %v313
        %v355 = vsub.f32 %v325, %v316
        %v356 = vsub.f32 %v328, %v310
        %v357 = vsub.f32 %v331, %v313
        %v358 = vsub.f32 %v334, %v316
        %v359 = vmul.f32 %v354, %v358
        %v360 = vmul.f32 %v355, %v357
        %v361 = vsub.f32 %v359, %v360
        %v362 = vmul.f32 %v355, %v356
        %v363 = vmul.f32 %v353, %v358
        %v364 = vsub.f32 %v362, %v363
        %v365 = vmul.f32 %v353, %v357
        %v366 = vmul.f32 %v354, %v356
        %v367 = vsub.f32 %v365, %v366
        %v368 = vsub.f32 %v319, %v328
        %v369 = vsub.f32 %v322, %v331
        %v370 = vsub.f32 %v325, %v334
        %v371 = vmul.f32 %v361, %v361
        %v372 = vmul.f32 %v364, %v364
        %v373 = vadd.f32 %v371, %v372
        %v374 = vmul.f32 %v367, %v367
        %v375 = vadd.f32 %v373, %v374
        %v376 = vrsqrt.pop %v375
        %v377 = vmul.f32 %v353, %v353
        %v378 = vmul.f32 %v354, %v354
        %v379 = vadd.f32 %v377, %v378
        %v380 = vmul.f32 %v355, %v355
        %v381 = vadd.f32 %v379, %v380
        %v382 = vmul.f32 %v356, %v356
        %v383 = vmul.f32 %v357, %v357
        %v384 = vadd.f32 %v382, %v383
        %v385 = vmul.f32 %v358, %v358
        %v386 = vadd.f32 %v384, %v385
        %v387 = vmul.f32 %v368, %v368
        %v388 = vmul.f32 %v369, %v369
        %v389 = vadd.f32 %v387, %v388
        %v390 = vmul.f32 %v370, %v370
        %v391 = vadd.f32 %v389, %v390
        %v392 = vmul.f32 %v381, %v386
        %v393 = vmul.f32 %v392, %v391
        %v394 = vrsqrt.pop %v393
        %v395 = vmul.f32 %v393, %v394
        %vm396 = vcmp.eq.f32.partialorder %v393, inf
        %v397 = vsel %vm396, %v393, %v395
        %vm398 = vcmp.eq.f32.partialorder %v393, 0.0
        %v399 = vand.u32 %v393, 2147483648
        %v400 = vsel %vm398, %v399, %v397
        %v401 = vmul.f32 %v400, 0.5
        %v402 = vmul.f32 %v401, %v376
        %v403 = vmul.f32 %v386, %v368
        %v404 = vmul.f32 %v386, %v369
        %v405 = vmul.f32 %v386, %v370
        %v406 = vmul.f32 %v391, %v356
        %v407 = vmul.f32 %v391, %v357
        %v408 = vmul.f32 %v391, %v358
        %v409 = vadd.f32 %v403, %v406
        %v410 = vadd.f32 %v404, %v407
        %v411 = vadd.f32 %v405, %v408
        %v412 = vmul.f32 %v410, %v367
        %v413 = vmul.f32 %v411, %v364
        %v414 = vsub.f32 %v412, %v413
        %v415 = vmul.f32 %v411, %v361
        %v416 = vmul.f32 %v409, %v367
        %v417 = vsub.f32 %v415, %v416
        %v418 = vmul.f32 %v409, %v364
        %v419 = vmul.f32 %v410, %v361
        %v420 = vsub.f32 %v418, %v419
        %v421 = vmul.f32 %v376, 0.5
        %v422 = vmul.f32 %v421, %v376
        %v423 = vmul.f32 %v422, %v414
        %v424 = vmul.f32 %v422, %v417
        %v425 = vmul.f32 %v422, %v420
        %v426 = vadd.f32 %v423, %v328
        %v427 = vadd.f32 %v424, %v331
        %v428 = vadd.f32 %v425, %v334
        %v429 = vmul.f32 %v376, %v361
        %v430 = vmul.f32 %v376, %v364
        %v431 = vmul.f32 %v376, %v367
        %v432 = vsub.f32 %v341, %v335
        %v433 = vsub.f32 %v343, %v337
        %v434 = vsub.f32 %v345, %v339
        %v435 = vsub.f32 %v347, %v335
        %v436 = vsub.f32 %v349, %v337
        %v437 = vsub.f32 %v351, %v339
        %v438 = vmul.f32 %v433, %v437
        %v439 = vmul.f32 %v434, %v436
        %v440 = vsub.f32 %v438, %v439
        %v441 = vmul.f32 %v434, %v435
        %v442 = vmul.f32 %v432, %v437
        %v443 = vsub.f32 %v441, %v442
        %v444 = vmul.f32 %v432, %v436
        %v445 = vmul.f32 %v433, %v435
        %v446 = vsub.f32 %v444, %v445
        %v447 = vsub.f32 %v341, %v347
        %v448 = vsub.f32 %v343, %v349
        %v449 = vsub.f32 %v345, %v351
        %v450 = vmul.f32 %v440, %v440
        %v451 = vmul.f32 %v443, %v443
        %v452 = vadd.f32 %v450, %v451
        %v453 = vmul.f32 %v446, %v446
        %v454 = vadd.f32 %v452, %v453
        %v455 = vrsqrt.pop %v454
        %v456 = vmul.f32 %v432, %v432
        %v457 = vmul.f32 %v433, %v433
        %v458 = vadd.f32 %v456, %v457
        %v459 = vmul.f32 %v434, %v434
        %v460 = vadd.f32 %v458, %v459
        %v461 = vmul.f32 %v435, %v435
        %v462 = vmul.f32 %v436, %v436
        %v463 = vadd.f32 %v461, %v462
        %v464 = vmul.f32 %v437, %v437
        %v465 = vadd.f32 %v463, %v464
        %v466 = vmul.f32 %v447, %v447
        %v467 = vmul.f32 %v448, %v448
        %v468 = vadd.f32 %v466, %v467
        %v469 = vmul.f32 %v449, %v449
        %v470 = vadd.f32 %v468, %v469
        %v471 = vmul.f32 %v460, %v465
        %v472 = vmul.f32 %v471, %v470
        %v473 = vrsqrt.pop %v472
        %v474 = vmul.f32 %v472, %v473
        %vm475 = vcmp.eq.f32.partialorder %v472, inf
        %v476 = vsel %vm475, %v472, %v474
        %vm477 = vcmp.eq.f32.partialorder %v472, 0.0
        %v478 = vand.u32 %v472, 2147483648
        %v479 = vsel %vm477, %v478, %v476
        %v480 = vmul.f32 %v479, 0.5
        %v481 = vmul.f32 %v480, %v455
        %v482 = vmul.f32 %v465, %v447
        %v483 = vmul.f32 %v465, %v448
        %v484 = vmul.f32 %v465, %v449
        %v485 = vmul.f32 %v470, %v435
        %v486 = vmul.f32 %v470, %v436
        %v487 = vmul.f32 %v470, %v437
        %v488 = vadd.f32 %v482, %v485
        %v489 = vadd.f32 %v483, %v486
        %v490 = vadd.f32 %v484, %v487
        %v491 = vmul.f32 %v489, %v446
        %v492 = vmul.f32 %v490, %v443
        %v493 = vsub.f32 %v491, %v492
        %v494 = vmul.f32 %v490, %v440
        %v495 = vmul.f32 %v488, %v446
        %v496 = vsub.f32 %v494, %v495
        %v497 = vmul.f32 %v488, %v443
        %v498 = vmul.f32 %v489, %v440
        %v499 = vsub.f32 %v497, %v498
        %v500 = vmul.f32 %v455, 0.5
        %v501 = vmul.f32 %v500, %v455
        %v502 = vmul.f32 %v501, %v493
        %v503 = vmul.f32 %v501, %v496
        %v504 = vmul.f32 %v501, %v499
        %v505 = vadd.f32 %v502, %v347
        %v506 = vadd.f32 %v503, %v349
        %v507 = vadd.f32 %v504, %v351
        %v508 = vmul.f32 %v455, %v440
        %v509 = vmul.f32 %v455, %v443
        %v510 = vmul.f32 %v455, %v446
        %v511 = vsub.f32 %v335, %v426
        %v512 = vsub.f32 %v337, %v427
        %v513 = vsub.f32 %v339, %v428
        %v514 = vmul.f32 %v511, %v429
        %v515 = vmul.f32 %v512, %v430
        %v516 = vadd.f32 %v514, %v515
        %v517 = vmul.f32 %v513, %v431
        %v518 = vadd.f32 %v516, %v517
        %v519 = vmul.f32 %v518, %v429
        %v520 = vmul.f32 %v518, %v430
        %v521 = vmul.f32 %v518, %v431
        %v522 = vsub.f32 %v511, %v519
        %v523 = vsub.f32 %v512, %v520
        %v524 = vsub.f32 %v513, %v521
        %v525 = vmul.f32 %v522, %v522
        %v526 = vmul.f32 %v523, %v523
        %v527 = vadd.f32 %v525, %v526
        %v528 = vmul.f32 %v524, %v524
        %v529 = vadd.f32 %v527, %v528
        %v530 = vrsqrt.pop %v529
        %v531 = vmul.f32 %v529, %v530
        %vm532 = vcmp.eq.f32.partialorder %v529, inf
        %v533 = vsel %vm532, %v529, %v531
        %vm534 = vcmp.eq.f32.partialorder %v529, 0.0
        %v535 = vand.u32 %v529, 2147483648
        %v536 = vsel %vm534, %v535, %v533
        %v537 = vmul.f32 %v518, 2.0
        %v538 = vmul.f32 %v402, %v537
        %v539 = vsub.f32 %v402, %v538
        %v540 = vadd.f32 %v539, 1e-06
        %v541 = vrcp.pop %v540
        %v542 = vmul.f32 %v536, %v541
        %v543 = vmul.f32 %v518, -0.0
        %v544 = vmul.f32 %v543, %v518
        %v545 = vsub.f32 %v544, %v518
        %v546 = vadd.f32 %v545, 0.5
        %v547 = vsub.f32 0.5, %v518
        %vm548 = vcmp.le.f32.partialorder %v518, -0.5
        %vm549 = vcmp.gt.f32.partialorder %v518, -1000.0
        %vm550 = vmand %vm548, %vm549
        %v551 = vsel %vm550, %v547, 0.0
        %vm552 = vcmp.gt.f32.partialorder %v518, -0.5
        %vm553 = vcmp.lt.f32.partialorder %v518, 0.5
        %vm554 = vmand %vm552, %vm553
        %v555 = vsel %vm554, %v546, %v551
        %vm556 = vcmp.lt.f32.partialorder %v542, 1.0
        %v557 = vsub.f32 1.0, %v542
        %v558 = vmul.f32 %v557, %v555
        %v559 = vmul.f32 %v558, %v558
        %v560 = vsel %vm556, %v559, 0.0
        %v561 = vmul.f32 %v560, %v560
        %v562 = vmul.f32 %v561, %v561
        %v563 = vsub.f32 %v341, %v426
        %v564 = vsub.f32 %v343, %v427
        %v565 = vsub.f32 %v345, %v428
        %v566 = vmul.f32 %v563, %v429
        %v567 = vmul.f32 %v564, %v430
        %v568 = vadd.f32 %v566, %v567
        %v569 = vmul.f32 %v565, %v431
        %v570 = vadd.f32 %v568, %v569
        %v571 = vmul.f32 %v570, %v429
        %v572 = vmul.f32 %v570, %v430
        %v573 = vmul.f32 %v570, %v431
        %v574 = vsub.f32 %v563, %v571
        %v575 = vsub.f32 %v564, %v572
        %v576 = vsub.f32 %v565, %v573
        %v577 = vmul.f32 %v574, %v574
        %v578 = vmul.f32 %v575, %v575
        %v579 = vadd.f32 %v577, %v578
        %v580 = vmul.f32 %v576, %v576
        %v581 = vadd.f32 %v579, %v580
        %v582 = vrsqrt.pop %v581
        %v583 = vmul.f32 %v581, %v582
        %vm584 = vcmp.eq.f32.partialorder %v581, inf
        %v585 = vsel %vm584, %v581, %v583
        %vm586 = vcmp.eq.f32.partialorder %v581, 0.0
        %v587 = vand.u32 %v581, 2147483648
        %v588 = vsel %vm586, %v587, %v585
        %v589 = vmul.f32 %v570, 2.0
        %v590 = vmul.f32 %v402, %v589
        %v591 = vsub.f32 %v402, %v590
        %v592 = vadd.f32 %v591, 1e-06
        %v593 = vrcp.pop %v592
        %v594 = vmul.f32 %v588, %v593
        %v595 = vmul.f32 %v570, -0.0
        %v596 = vmul.f32 %v595, %v570
        %v597 = vsub.f32 %v596, %v570
        %v598 = vadd.f32 %v597, 0.5
        %v599 = vsub.f32 0.5, %v570
        %vm600 = vcmp.le.f32.partialorder %v570, -0.5
        %vm601 = vcmp.gt.f32.partialorder %v570, -1000.0
        %vm602 = vmand %vm600, %vm601
        %v603 = vsel %vm602, %v599, 0.0
        %vm604 = vcmp.gt.f32.partialorder %v570, -0.5
        %vm605 = vcmp.lt.f32.partialorder %v570, 0.5
        %vm606 = vmand %vm604, %vm605
        %v607 = vsel %vm606, %v598, %v603
        %vm608 = vcmp.lt.f32.partialorder %v594, 1.0
        %v609 = vsub.f32 1.0, %v594
        %v610 = vmul.f32 %v609, %v607
        %v611 = vmul.f32 %v610, %v610
        %v612 = vsel %vm608, %v611, 0.0
        %v613 = vmul.f32 %v612, %v612
        %v614 = vmul.f32 %v613, %v613
        %v615 = vadd.f32 %v562, %v614
        %v616 = vsub.f32 %v347, %v426
        %v617 = vsub.f32 %v349, %v427
        %v618 = vsub.f32 %v351, %v428
        %v619 = vmul.f32 %v616, %v429
        %v620 = vmul.f32 %v617, %v430
        %v621 = vadd.f32 %v619, %v620
        %v622 = vmul.f32 %v618, %v431
        %v623 = vadd.f32 %v621, %v622
        %v624 = vmul.f32 %v623, %v429
        %v625 = vmul.f32 %v623, %v430
        %v626 = vmul.f32 %v623, %v431
        %v627 = vsub.f32 %v616, %v624
        %v628 = vsub.f32 %v617, %v625
        %v629 = vsub.f32 %v618, %v626
        %v630 = vmul.f32 %v627, %v627
        %v631 = vmul.f32 %v628, %v628
        %v632 = vadd.f32 %v630, %v631
        %v633 = vmul.f32 %v629, %v629
        %v634 = vadd.f32 %v632, %v633
        %v635 = vrsqrt.pop %v634
        %v636 = vmul.f32 %v634, %v635
        %vm637 = vcmp.eq.f32.partialorder %v634, inf
        %v638 = vsel %vm637, %v634, %v636
        %vm639 = vcmp.eq.f32.partialorder %v634, 0.0
        %v640 = vand.u32 %v634, 2147483648
        %v641 = vsel %vm639, %v640, %v638
        %v642 = vmul.f32 %v623, 2.0
        %v643 = vmul.f32 %v402, %v642
        %v644 = vsub.f32 %v402, %v643
        %v645 = vadd.f32 %v644, 1e-06
        %v646 = vrcp.pop %v645
        %v647 = vmul.f32 %v641, %v646
        %v648 = vmul.f32 %v623, -0.0
        %v649 = vmul.f32 %v648, %v623
        %v650 = vsub.f32 %v649, %v623
        %v651 = vadd.f32 %v650, 0.5
        %v652 = vsub.f32 0.5, %v623
        %vm653 = vcmp.le.f32.partialorder %v623, -0.5
        %vm654 = vcmp.gt.f32.partialorder %v623, -1000.0
        %vm655 = vmand %vm653, %vm654
        %v656 = vsel %vm655, %v652, 0.0
        %vm657 = vcmp.gt.f32.partialorder %v623, -0.5
        %vm658 = vcmp.lt.f32.partialorder %v623, 0.5
        %vm659 = vmand %vm657, %vm658
        %v660 = vsel %vm659, %v651, %v656
        %vm661 = vcmp.lt.f32.partialorder %v647, 1.0
        %v662 = vsub.f32 1.0, %v647
        %v663 = vmul.f32 %v662, %v660
        %v664 = vmul.f32 %v663, %v663
        %v665 = vsel %vm661, %v664, 0.0
        %v666 = vmul.f32 %v665, %v665
        %v667 = vmul.f32 %v666, %v666
        %v668 = vadd.f32 %v615, %v667
        %v669 = vsub.f32 %v310, %v505
        %v670 = vsub.f32 %v313, %v506
        %v671 = vsub.f32 %v316, %v507
        %v672 = vmul.f32 %v669, %v508
        %v673 = vmul.f32 %v670, %v509
        %v674 = vadd.f32 %v672, %v673
        %v675 = vmul.f32 %v671, %v510
        %v676 = vadd.f32 %v674, %v675
        %v677 = vmul.f32 %v676, %v508
        %v678 = vmul.f32 %v676, %v509
        %v679 = vmul.f32 %v676, %v510
        %v680 = vsub.f32 %v669, %v677
        %v681 = vsub.f32 %v670, %v678
        %v682 = vsub.f32 %v671, %v679
        %v683 = vmul.f32 %v680, %v680
        %v684 = vmul.f32 %v681, %v681
        %v685 = vadd.f32 %v683, %v684
        %v686 = vmul.f32 %v682, %v682
        %v687 = vadd.f32 %v685, %v686
        %v688 = vrsqrt.pop %v687
        %v689 = vmul.f32 %v687, %v688
        %vm690 = vcmp.eq.f32.partialorder %v687, inf
        %v691 = vsel %vm690, %v687, %v689
        %vm692 = vcmp.eq.f32.partialorder %v687, 0.0
        %v693 = vand.u32 %v687, 2147483648
        %v694 = vsel %vm692, %v693, %v691
        %v695 = vmul.f32 %v676, 2.0
        %v696 = vmul.f32 %v481, %v695
        %v697 = vsub.f32 %v481, %v696
        %v698 = vadd.f32 %v697, 1e-06
        %v699 = vrcp.pop %v698
        %v700 = vmul.f32 %v694, %v699
        %v701 = vmul.f32 %v676, -0.0
        %v702 = vmul.f32 %v701, %v676
        %v703 = vsub.f32 %v702, %v676
        %v704 = vadd.f32 %v703, 0.5
        %v705 = vsub.f32 0.5, %v676
        %vm706 = vcmp.le.f32.partialorder %v676, -0.5
        %vm707 = vcmp.gt.f32.partialorder %v676, -1000.0
        %vm708 = vmand %vm706, %vm707
        %v709 = vsel %vm708, %v705, 0.0
        %vm710 = vcmp.gt.f32.partialorder %v676, -0.5
        %vm711 = vcmp.lt.f32.partialorder %v676, 0.5
        %vm712 = vmand %vm710, %vm711
        %v713 = vsel %vm712, %v704, %v709
        %vm714 = vcmp.lt.f32.partialorder %v700, 1.0
        %v715 = vsub.f32 1.0, %v700
        %v716 = vmul.f32 %v715, %v713
        %v717 = vmul.f32 %v716, %v716
        %v718 = vsel %vm714, %v717, 0.0
        %v719 = vmul.f32 %v718, %v718
        %v720 = vmul.f32 %v719, %v719
        %v721 = vsub.f32 %v319, %v505
        %v722 = vsub.f32 %v322, %v506
        %v723 = vsub.f32 %v325, %v507
        %v724 = vmul.f32 %v721, %v508
        %v725 = vmul.f32 %v722, %v509
        %v726 = vadd.f32 %v724, %v725
        %v727 = vmul.f32 %v723, %v510
        %v728 = vadd.f32 %v726, %v727
        %v729 = vmul.f32 %v728, %v508
        %v730 = vmul.f32 %v728, %v509
        %v731 = vmul.f32 %v728, %v510
        %v732 = vsub.f32 %v721, %v729
        %v733 = vsub.f32 %v722, %v730
        %v734 = vsub.f32 %v723, %v731
        %v735 = vmul.f32 %v732, %v732
        %v736 = vmul.f32 %v733, %v733
        %v737 = vadd.f32 %v735, %v736
        %v738 = vmul.f32 %v734, %v734
        %v739 = vadd.f32 %v737, %v738
        %v740 = vrsqrt.pop %v739
        %v741 = vmul.f32 %v739, %v740
        %vm742 = vcmp.eq.f32.partialorder %v739, inf
        %v743 = vsel %vm742, %v739, %v741
        %vm744 = vcmp.eq.f32.partialorder %v739, 0.0
        %v745 = vand.u32 %v739, 2147483648
        %v746 = vsel %vm744, %v745, %v743
        %v747 = vmul.f32 %v728, 2.0
        %v748 = vmul.f32 %v481, %v747
        %v749 = vsub.f32 %v481, %v748
        %v750 = vadd.f32 %v749, 1e-06
        %v751 = vrcp.pop %v750
        %v752 = vmul.f32 %v746, %v751
        %v753 = vmul.f32 %v728, -0.0
        %v754 = vmul.f32 %v753, %v728
        %v755 = vsub.f32 %v754, %v728
        %v756 = vadd.f32 %v755, 0.5
        %v757 = vsub.f32 0.5, %v728
        %vm758 = vcmp.le.f32.partialorder %v728, -0.5
        %vm759 = vcmp.gt.f32.partialorder %v728, -1000.0
        %vm760 = vmand %vm758, %vm759
        %v761 = vsel %vm760, %v757, 0.0
        %vm762 = vcmp.gt.f32.partialorder %v728, -0.5
        %vm763 = vcmp.lt.f32.partialorder %v728, 0.5
        %vm764 = vmand %vm762, %vm763
        %v765 = vsel %vm764, %v756, %v761
        %vm766 = vcmp.lt.f32.partialorder %v752, 1.0
        %v767 = vsub.f32 1.0, %v752
        %v768 = vmul.f32 %v767, %v765
        %v769 = vmul.f32 %v768, %v768
        %v770 = vsel %vm766, %v769, 0.0
        %v771 = vmul.f32 %v770, %v770
        %v772 = vmul.f32 %v771, %v771
        %v773 = vadd.f32 %v720, %v772
        %v774 = vsub.f32 %v328, %v505
        %v775 = vsub.f32 %v331, %v506
        %v776 = vsub.f32 %v334, %v507
        %v777 = vmul.f32 %v774, %v508
        %v778 = vmul.f32 %v775, %v509
        %v779 = vadd.f32 %v777, %v778
        %v780 = vmul.f32 %v776, %v510
        %v781 = vadd.f32 %v779, %v780
        %v782 = vmul.f32 %v781, %v508
        %v783 = vmul.f32 %v781, %v509
        %v784 = vmul.f32 %v781, %v510
        %v785 = vsub.f32 %v774, %v782
        %v786 = vsub.f32 %v775, %v783
        %v787 = vsub.f32 %v776, %v784
        %v788 = vmul.f32 %v785, %v785
        %v789 = vmul.f32 %v786, %v786
        %v790 = vadd.f32 %v788, %v789
        %v791 = vmul.f32 %v787, %v787
        %v792 = vadd.f32 %v790, %v791
        %v793 = vrsqrt.pop %v792
        %v794 = vmul.f32 %v792, %v793
        %vm795 = vcmp.eq.f32.partialorder %v792, inf
        %v796 = vsel %vm795, %v792, %v794
        %vm797 = vcmp.eq.f32.partialorder %v792, 0.0
        %v798 = vand.u32 %v792, 2147483648
        %v799 = vsel %vm797, %v798, %v796
        %v800 = vmul.f32 %v781, 2.0
        %v801 = vmul.f32 %v481, %v800
        %v802 = vsub.f32 %v481, %v801
        %v803 = vadd.f32 %v802, 1e-06
        %v804 = vrcp.pop %v803
        %v805 = vmul.f32 %v799, %v804
        %v806 = vmul.f32 %v781, -0.0
        %v807 = vmul.f32 %v806, %v781
        %v808 = vsub.f32 %v807, %v781
        %v809 = vadd.f32 %v808, 0.5
        %v810 = vsub.f32 0.5, %v781
        %vm811 = vcmp.le.f32.partialorder %v781, -0.5
        %vm812 = vcmp.gt.f32.partialorder %v781, -1000.0
        %vm813 = vmand %vm811, %vm812
        %v814 = vsel %vm813, %v810, 0.0
        %vm815 = vcmp.gt.f32.partialorder %v781, -0.5
        %vm816 = vcmp.lt.f32.partialorder %v781, 0.5
        %vm817 = vmand %vm815, %vm816
        %v818 = vsel %vm817, %v809, %v814
        %vm819 = vcmp.lt.f32.partialorder %v805, 1.0
        %v820 = vsub.f32 1.0, %v805
        %v821 = vmul.f32 %v820, %v818
        %v822 = vmul.f32 %v821, %v821
        %v823 = vsel %vm819, %v822, 0.0
        %v824 = vmul.f32 %v823, %v823
        %v825 = vmul.f32 %v824, %v824
        %v826 = vadd.f32 %v773, %v825
        %vm827 = vcmp.gt.f32.partialorder %v352, 0.5
        %v828 = vadd.f32 %v668, %v826
        %v829 = vsel %vm827, %v828, 0.0
        %v830 = vadd.f32 %v829, 0.0
        %v831 = vld [vmem:[%s301] sm:$0xff]
        %v832 = vadd.f32 %v831, %v830
        %833 = vst [vmem:[%s301] sm:$0xff] %v832
        %s834 = sand.u32 %s142, 1
        %s835 = scalar_lea.sflag [#allocation4], %s834
        %s836 = sand.u32 %s142, 1
        %s837 = smul.addr %s836, 8
        %s838 = scalar_lea.vmem [#allocation8], %s837
        // Predicated region
        $region49: #{tpu_custom_call.1} parent=31 // pred_check
          %p839 = pneg %p152
        $region50: #{tpu_custom_call.1} parent=31 // pred_check_branch
          %841 = sbr.rel (%p839) target = $region52
        $region51: #{tpu_custom_call.1} parent=31 // pred_region
          %s843 = ssub.s32 128, 128
          %844 = vsyncadd %s835, %s843
          %s845 = smul.addr %s28, 2
          %s846 = sadd.s32 %s29, %s845
          %s847 = smul.addr %s846, 128
          %s848 = scalar_lea.hbm %s3, %s847
          %s850 = sshll.u32 %s838, 4
          %s851 = int_to_ptr.vmem [resolvable:$true] %s850
          %853 = dma.vmem_to_hbm [thread:$0]  %s851, 128, %s848, %s835
        $region52: #{tpu_custom_call.1} parent=31 // pred_fallthru
          _
      $region32: #{tpu_custom_call.1} parent=5 // pred_fallthru
        _
      %p854 = scmp.le.s32.totalorder 2, %s18
      // Predicated region
      $region53: #{tpu_custom_call.1} parent=5 // pred_check
        %p855 = pneg %p854
      $region54: #{tpu_custom_call.1} parent=5 // pred_check_branch
        %857 = sbr.rel (%p855) target = $region56
      $region55: #{tpu_custom_call.1} parent=5 // pred_region
        %s858 = ssub.s32 %s18, 2
        // Predicated region
        $region57: #{tpu_custom_call.1} parent=55 // pred_check
          %p859 = pneg %p158
        $region58: #{tpu_custom_call.1} parent=55 // pred_check_branch
          %861 = sbr.rel (%p859) target = $region60
        $region59: #{tpu_custom_call.1} parent=55 // pred_region
          %s862 = sand.u32 %s143, 1
          %s863 = scalar_lea.sflag [#allocation4], %s862
          %s864 = sand.u32 %s143, 1
          %s865 = smul.addr %s864, 8
          %s866 = scalar_lea.vmem [#allocation8], %s865
          %867 = dma.done %s863, 128
        $region60: #{tpu_custom_call.1} parent=55 // pred_fallthru
          _
      $region56: #{tpu_custom_call.1} parent=5 // pred_fallthru
        _
    $region6: #{tpu_custom_call.1} parent=1 // loop_footer
      %s22 = sadd.s32 1, %s18
    $region7: #{tpu_custom_call.1} parent=1 // loop_footer_branch
      %17 = sbr.rel target = $region3
    $region8: #{tpu_custom_call.1} parent=1 // loop_exit
      _
    %868 = vsyncpa [#allocation3], 1
    %s869 = scalar_lea.sflag [#allocation3], 1
    %870 = vsyncpa %s869, 1
    %871 = vsyncpa [#allocation6], 1
    %s872 = scalar_lea.sflag [#allocation6], 1
    %873 = vsyncpa %s872, 1
    %874 = vsyncpa [#allocation4], 1
    %s875 = scalar_lea.sflag [#allocation4], 1
    %876 = vsyncpa %s875, 1

</llo_original>
